<compile_context>
chip_gen: v7x
topology: tpu7x:2x2x1
jax: 0.10.0
libtpu: 0.0.40
codegen_flags: <defaults>
</compile_context>

<pallas_src>
import functools

import jax
import jax.numpy as jnp
from jax.experimental import pallas as pl
from jax.experimental.pallas import tpu as pltpu


def _round_up(x, m):
    return (x + m - 1) // m * m


def _mlp_kernel(x_ref, w1e_ref, b1e_ref, w2e_ref, b2_ref, o_ref, *,
                chunk_rows, n_chunks, precision):
    # x_ref : (tile_rows, pack*num)   -- pack samples per lane-dense row
    # w1e   : (pack*num, pack*H)      block-diagonal kron(I_pack, w1.T)
    # b1e   : (1, pack*H)             tiled bias
    # w2e   : (pack*H, pack)          block-diagonal kron(I_pack, w2.T)
    # b2    : (1, 1)
    # o_ref : (tile_rows, pack)       one output scalar per packed sample
    w1e = w1e_ref[...]
    b1e = b1e_ref[...]
    w2e = w2e_ref[...]
    b2v = b2_ref[...]

    def compute(xc):
        h = jnp.dot(xc, w1e, preferred_element_type=jnp.float32,
                    precision=precision)
        h = jnp.maximum(h + b1e, 0.0)                      # bias + ReLU (VPU)
        y = jnp.dot(h, w2e, preferred_element_type=jnp.float32,
                    precision=precision)
        return (y + b2v).astype(o_ref.dtype)

    if n_chunks == 1:
        o_ref[...] = compute(x_ref[...])
    else:
        # Chunk the tile so the (chunk, pack*H) hidden activation stays in a
        # bounded number of vregs instead of spilling through VMEM.
        def body(c, carry):
            r0 = pl.multiple_of(c * chunk_rows, chunk_rows)
            xc = x_ref[pl.ds(r0, chunk_rows), :]
            o_ref[pl.ds(r0, chunk_rows), :] = compute(xc)
            return carry

        jax.lax.fori_loop(0, n_chunks, body, 0, unroll=True)


def linear_regression_forward(x, w1, b1, w2, b2, *,
                              max_tile_rows=2048, chunk_rows=128):
    """Forward pass of LinearRegressionModel.

    x : (B, num)  f32 (or bf16)
    w1: (H, num)  (PyTorch l1.weight layout)
    b1: (H,)
    w2: (1, H)    (PyTorch l2.weight layout)
    b2: (1,)
    returns (B, 1) in x.dtype
    """
    B, num = x.shape
    H = w1.shape[0]
    compute_dtype = x.dtype

    # How many samples fit in one 128-lane row (8 for num=16). Falls back to
    # 1 (plain layout) if num does not divide 128.
    pack = 128 // num if (num <= 128 and 128 % num == 0) else 1
    lane_w = pack * num

    b_pad = _round_up(B, pack)
    if b_pad != B:
        # Ragged tail only: pads at most pack-1 rows.
        x = jnp.pad(x, ((0, b_pad - B), (0, 0)))
    rows = b_pad // pack
    x_packed = x.reshape(rows, lane_w)     # free, row-major preserving reshape

    # Packed weights (block-diagonal); tiny (<=128 KiB), built once per call.
    eye = jnp.eye(pack, dtype=jnp.float32)
    w1e = jnp.kron(eye, w1.T.astype(jnp.float32)).astype(compute_dtype)
    b1e = jnp.tile(b1.astype(jnp.float32), pack).reshape(1, pack * H)
    w2e = jnp.kron(eye, w2.astype(jnp.float32).reshape(H, 1))
    b2e = b2.astype(jnp.float32).reshape(1, 1)

    # Tile selection: large lane-dense tiles to amortize per-grid-step
    # overhead; even number of grid steps so both v7x TensorCores get work.
    if rows <= chunk_rows:
        tile_rows, chunk, n_chunks = rows, rows, 1
    else:
        n_steps = 2 * max(1, pl.cdiv(rows, 2 * max_tile_rows))
        tile_rows = min(max_tile_rows,
                        _round_up(pl.cdiv(rows, n_steps), chunk_rows))
        chunk = chunk_rows
        n_chunks = tile_rows // chunk

    precision = (jax.lax.Precision.HIGHEST
                 if compute_dtype == jnp.float32 else jax.lax.Precision.DEFAULT)

    kernel = functools.partial(_mlp_kernel, chunk_rows=chunk,
                               n_chunks=n_chunks, precision=precision)

    out = pl.pallas_call(
        kernel,
        out_shape=jax.ShapeDtypeStruct((rows, pack), compute_dtype),
        grid=(pl.cdiv(rows, tile_rows),),
        in_specs=[
            # x walks the (packed) batch axis; fully lane-dense blocks.
            pl.BlockSpec((tile_rows, lane_w), lambda i: (i, 0)),
            # Weights / biases: constant index_map -> resident in VMEM.
            pl.BlockSpec((lane_w, pack * H), lambda i: (0, 0)),
            pl.BlockSpec((1, pack * H), lambda i: (0, 0)),
            pl.BlockSpec((pack * H, pack), lambda i: (0, 0)),
            pl.BlockSpec((1, 1), lambda i: (0, 0)),
        ],
        out_specs=pl.BlockSpec((tile_rows, pack), lambda i: (i, 0)),
        compiler_params=pltpu.CompilerParams(
            dimension_semantics=("parallel",)),
    )(x_packed, w1e, b1e, w2e, b2e)

    # (rows, pack) is row-major contiguous over samples -> restore (B, 1).
    return out.reshape(b_pad, 1)[:B]


def init_params(key, num, n_hidden=32):
    """nn.Linear-style U(-1/sqrt(fan_in), 1/sqrt(fan_in)) init, PyTorch layout."""
    k1, k2, k3, k4 = jax.random.split(key, 4)
    bound1 = 1.0 / jnp.sqrt(num)
    bound2 = 1.0 / jnp.sqrt(n_hidden)
    w1 = jax.random.uniform(k1, (n_hidden, num), jnp.float32, -bound1, bound1)
    b1 = jax.random.uniform(k2, (n_hidden,), jnp.float32, -bound1, bound1)
    w2 = jax.random.uniform(k3, (1, n_hidden), jnp.float32, -bound2, bound2)
    b2 = jax.random.uniform(k4, (1,), jnp.float32, -bound2, bound2)
    return w1, b1, w2, b2


if __name__ == "__main__":
    key = jax.random.PRNGKey(0)
    kp, kx1, kx2, kx3 = jax.random.split(key, 4)

    num, n_hidden = 16, 32
    w1, b1, w2, b2 = init_params(kp, num, n_hidden)

    fwd = jax.jit(linear_regression_forward)

    def reference(x):
        hp = jax.lax.Precision.HIGHEST
        h = jnp.maximum(jnp.dot(x, w1.T, precision=hp) + b1, 0.0)
        return jnp.dot(h, w2.T, precision=hp) + b2

    # Native tiny shape, a ragged batch (exercises the pad/tail path), and a
    # multi-tile batch (exercises the grid, resident weights and chunk loop).
    for batch, kx in ((8, kx1), (131, kx2), (8192, kx3)):
        x = jax.random.normal(kx, (batch, num), dtype=jnp.float32)
        y = jax.block_until_ready(fwd(x, w1, b1, w2, b2))
        assert y.shape == (batch, 1)
        y_ref = reference(x)
        assert jnp.allclose(y, y_ref, atol=1e-4, rtol=1e-4), (
            float(jnp.max(jnp.abs(y - y_ref))))

    print("KERNEL_OK")
</pallas_src>

<mosaic_0001>
module attributes {stable_mosaic.version = 11 : i64} {
  func.func @_mlp_kernel(%arg0: i32, %arg1: memref<1x128xf32, #tpu.memory_space<vmem>>, %arg2: memref<128x256xf32, #tpu.memory_space<vmem>>, %arg3: memref<1x256xf32, #tpu.memory_space<vmem>>, %arg4: memref<256x8xf32, #tpu.memory_space<vmem>>, %arg5: memref<1x1xf32, #tpu.memory_space<vmem>>, %arg6: memref<1x8xf32, #tpu.memory_space<vmem>>) attributes {dimension_semantics = [#tpu.dimension_semantics<parallel>], iteration_bounds = array<i64: 1>, scalar_prefetch = 0 : i64, scratch_operands = 0 : i64, tpu.core_type = #tpu.core_type<tc>, window_params = [{transform_indices = @transform_0, window_bounds = array<i64: 1, 128>}, {pipeline_mode = #tpu.pipeline_mode<synchronous>, transform_indices = @transform_1, window_bounds = array<i64: 128, 256>}, {pipeline_mode = #tpu.pipeline_mode<synchronous>, transform_indices = @transform_2, window_bounds = array<i64: 1, 256>}, {pipeline_mode = #tpu.pipeline_mode<synchronous>, transform_indices = @transform_3, window_bounds = array<i64: 256, 8>}, {pipeline_mode = #tpu.pipeline_mode<synchronous>, transform_indices = @transform_4, window_bounds = array<i64: 1, 1>}, {transform_indices = @transform_5, window_bounds = array<i64: 1, 8>}]} {
    %c0 = arith.constant 0 : index
    %c0_0 = arith.constant 0 : index
    %0 = vector.load %arg2[%c0, %c0_0] : memref<128x256xf32, #tpu.memory_space<vmem>>, vector<128x256xf32>
    %c0_1 = arith.constant 0 : index
    %c0_2 = arith.constant 0 : index
    %1 = vector.load %arg3[%c0_1, %c0_2] : memref<1x256xf32, #tpu.memory_space<vmem>>, vector<1x256xf32>
    %c0_3 = arith.constant 0 : index
    %c0_4 = arith.constant 0 : index
    %2 = vector.load %arg4[%c0_3, %c0_4] : memref<256x8xf32, #tpu.memory_space<vmem>>, vector<256x8xf32>
    %c0_5 = arith.constant 0 : index
    %c0_6 = arith.constant 0 : index
    %3 = vector.load %arg5[%c0_5, %c0_6] : memref<1x1xf32, #tpu.memory_space<vmem>>, vector<1x1xf32>
    %c0_7 = arith.constant 0 : index
    %c0_8 = arith.constant 0 : index
    %4 = vector.load %arg1[%c0_7, %c0_8] : memref<1x128xf32, #tpu.memory_space<vmem>>, vector<1x128xf32>
    %cst = arith.constant dense<0.000000e+00> : vector<1x256xf32>
    %5 = tpu.matmul %4, %0, %cst {dimension_numbers = #tpu.dot_dimension_numbers<[1], [0], [0], [1], [0, 0, 1, 1], [], []>, precision = #tpu.contract_precision<fp32>} : vector<1x128xf32>, vector<128x256xf32>, vector<1x256xf32> -> vector<1x256xf32>
    %6 = arith.addf %5, %1 : vector<1x256xf32>
    %cst_9 = arith.constant 0.000000e+00 : f32
    %7 = vector.broadcast %cst_9 : f32 to vector<1x256xf32>
    %8 = arith.maximumf %6, %7 : vector<1x256xf32>
    %cst_10 = arith.constant dense<0.000000e+00> : vector<1x8xf32>
    %9 = tpu.matmul %8, %2, %cst_10 {dimension_numbers = #tpu.dot_dimension_numbers<[1], [0], [0], [1], [0, 0, 1, 1], [], []>, precision = #tpu.contract_precision<fp32>} : vector<1x256xf32>, vector<256x8xf32>, vector<1x8xf32> -> vector<1x8xf32>
    %10 = vector.broadcast %3 : vector<1x1xf32> to vector<1x8xf32>
    %11 = arith.addf %9, %10 : vector<1x8xf32>
    %c0_11 = arith.constant 0 : index
    %c0_12 = arith.constant 0 : index
    %12 = vector.load %arg6[%c0_11, %c0_12] : memref<1x8xf32, #tpu.memory_space<vmem>>, vector<1x8xf32>
    tpu.vector_store %arg6[%c0_11, %c0_12], %11 {strides = array<i32>} : memref<1x8xf32, #tpu.memory_space<vmem>>, vector<1x8xf32>,
    return
  }
  func.func @transform_0(%arg0: i32) -> (i32, i32) {
    %c0_i32 = arith.constant 0 : i32
    %c0_i32_0 = arith.constant 0 : i32
    return %arg0, %c0_i32 : i32, i32
  }
  func.func @transform_1(%arg0: i32) -> (i32, i32) {
    %c0_i32 = arith.constant 0 : i32
    %c0_i32_0 = arith.constant 0 : i32
    %c0_i32_1 = arith.constant 0 : i32
    return %c0_i32, %c0_i32_0 : i32, i32
  }
  func.func @transform_2(%arg0: i32) -> (i32, i32) {
    %c0_i32 = arith.constant 0 : i32
    %c0_i32_0 = arith.constant 0 : i32
    %c0_i32_1 = arith.constant 0 : i32
    return %c0_i32, %c0_i32_0 : i32, i32
  }
  func.func @transform_3(%arg0: i32) -> (i32, i32) {
    %c0_i32 = arith.constant 0 : i32
    %c0_i32_0 = arith.constant 0 : i32
    %c0_i32_1 = arith.constant 0 : i32
    return %c0_i32, %c0_i32_0 : i32, i32
  }
  func.func @transform_4(%arg0: i32) -> (i32, i32) {
    %c0_i32 = arith.constant 0 : i32
    %c0_i32_0 = arith.constant 0 : i32
    %c0_i32_1 = arith.constant 0 : i32
    return %c0_i32, %c0_i32_0 : i32, i32
  }
  func.func @transform_5(%arg0: i32) -> (i32, i32) {
    %c0_i32 = arith.constant 0 : i32
    %c0_i32_0 = arith.constant 0 : i32
    return %arg0, %c0_i32 : i32, i32
  }
}

</mosaic_0001>

<llo_original>
// kernel: tile.9
$region0: #{tile.9}
  %s0 = inlined_call_operand.vmem [shape: f32[8,32], index: 0, kind: input, shape index: {}]
  %s1 = inlined_call_operand.vmem [shape: f32[1,256], index: 1, kind: output, shape index: {}]
  $region1: #{tile.9} parent=0
    #allocation0 [shape = 'u8[8192]{0}', space=vmem, size = 0x2000, scoped, tag = 'scoped mem for output reshape']
    %s2 = smov 3
    %v3 = vld [vmem:[%s0] ss:$4 sm:%s2]
    %vm4 = vcmask 261120
    %5 = vst.msk [vmem:[#allocation0] ss:$8 sm:$0x3] %vm4, %v3
    %s6 = scalar_lea.vmem %s0, 3
    %s7 = smov 3
    %v8 = vld [vmem:[%s6] ss:$4 sm:%s7]
    %9 = vrot.lane.b32.xlu0 %v8, 96
    %v10 = vpop.permute.xlu0 %9
    %vm11 = vcmask 1048320
    %12 = vst.msk [vmem:[#allocation0] ss:$8 sm:$0x3] %vm11, %v10
    %s13 = scalar_lea.vmem %s0, 2
    %s14 = smov 3
    %v15 = vld [vmem:[%s13] ss:$4 sm:%s14]
    %16 = vrot.lane.b32.xlu0 %v15, 64
    %v17 = vpop.permute.xlu0 %16
    %vm18 = vcmask 785920
    %19 = vst.msk [vmem:[#allocation0] ss:$8 sm:$0x3] %vm18, %v17
    %s20 = scalar_lea.vmem %s0, 1
    %s21 = smov 3
    %v22 = vld [vmem:[%s20] ss:$4 sm:%s21]
    %23 = vrot.lane.b32.xlu0 %v22, 32
    %v24 = vpop.permute.xlu0 %23
    %vm25 = vcmask 523520
    %26 = vst.msk [vmem:[#allocation0] ss:$8 sm:$0x3] %vm25, %v24
    %s28 = sshllo.u32 0, 1
    %v30 = vld [vmem:[#allocation0] sm:%s28]
    %s31 = sshllo.u32 0, 1
    %32 = vst [vmem:[%s1] sm:%s31] %v30
    %s33 = scalar_lea.vmem [#allocation0], 8
    %v34 = vld [vmem:[%s33] sm:%s28]
    %s35 = sshllo.u32 0, 1
    %s36 = scalar_lea.vmem %s1, 1
    %37 = vst [vmem:[%s36] sm:%s35] %v34

// kernel: linear_regression_forward.1
$region0: #{linear_regression_forward.1}
  #allocation0 [shape = 'u32[]', space=smem, size = 0x4, offset = 0x4, fixed_abs, tag = 'smem constant byte address 0x4 - core index']
  #allocation1 [shape = 'u32[144,128]{1,0:T(1,128)}', space=vmem, size = 0x12000, scoped, tag = 'internal scratch']
  #allocation2 [shape = 'f32[1,1]{1,0:T(1,128)S(1)}', space=vmem, size = 0x200, scoped, tag = 'scoped memory for linear_regression_forward.1']
  %s0 = inlined_call_operand.vmem [shape: f32[1,128], index: 0, kind: input, shape index: {}]
  %s1 = inlined_call_operand.vmem [shape: f32[128,256], index: 1, kind: input, shape index: {}]
  %s2 = inlined_call_operand.vmem [shape: f32[1,256], index: 2, kind: input, shape index: {}]
  %s3 = inlined_call_operand.vmem [shape: f32[256,8], index: 3, kind: input, shape index: {}]
  %s4 = inlined_call_operand.<no memory space> [shape: f32[1,1], index: 4, kind: input, shape index: {}]
  %s5 = inlined_call_operand.hbm [shape: f32[1,8], index: 5, kind: output, shape index: {}]
  %s6 = sld [smem:[#allocation0]]
  $region30: #{linear_regression_forward.1} parent=0
    _
  %s8 = ssub.s32 1, %s6
  %s9 = scalar_select 0, %s8, %s6
  %v10 = vstv %s4
  %11 = vst [vmem:[#allocation2] sm:$0x1] %v10
  $region1: #{linear_regression_forward.1} parent=0
    #allocation3 [shape = 'u8[512]{0}', space=vmem, size = 0x400, scoped, tag = 'output window, operand 0, single buffered']
    #allocation4 [shape = 's32[1]{0}', space=sflag, size = 0x4, scoped, tag = 'scoped memory for linear_regression_forward.1']
    %12 = vsyncpa [#allocation4], 0
    // Predicated region
    $region2: #{linear_regression_forward.1} parent=1 // pred_check
      _
    $region3: #{linear_regression_forward.1} parent=1 // pred_check_branch
      %14 = sbr.rel (0) target = $region5
    $region4: #{linear_regression_forward.1} parent=1 // pred_region
      _
    $region5: #{linear_regression_forward.1} parent=1 // pred_fallthru
      _
    // Predicated region
    $region6: #{linear_regression_forward.1} parent=1 // pred_check
      _
    $region7: #{linear_regression_forward.1} parent=1 // pred_check_branch
      %16 = sbr.rel (0) target = $region9
    $region8: #{linear_regression_forward.1} parent=1 // pred_region
      _
    $region9: #{linear_regression_forward.1} parent=1 // pred_fallthru
      _
    // Predicated region
    $region10: #{linear_regression_forward.1} parent=1 // pred_check
      _
    $region11: #{linear_regression_forward.1} parent=1 // pred_check_branch
      %18 = sbr.rel (0) target = $region13
    $region12: #{linear_regression_forward.1} parent=1 // pred_region
      _
    $region13: #{linear_regression_forward.1} parent=1 // pred_fallthru
      _
    // Predicated region
    $region14: #{linear_regression_forward.1} parent=1 // pred_check
      _
    $region15: #{linear_regression_forward.1} parent=1 // pred_check_branch
      %20 = sbr.rel (0) target = $region17
    $region16: #{linear_regression_forward.1} parent=1 // pred_region
      _
    $region17: #{linear_regression_forward.1} parent=1 // pred_fallthru
      _
    // Predicated region
    $region18: #{linear_regression_forward.1} parent=1 // pred_check
      _
    $region19: #{linear_regression_forward.1} parent=1 // pred_check_branch
      %22 = sbr.rel (0) target = $region21
    $region20: #{linear_regression_forward.1} parent=1 // pred_region
      _
    $region21: #{linear_regression_forward.1} parent=1 // pred_fallthru
      _
    %v23 = vld [vmem:[%s1] sm:$0xff]
    %v24 = vld [vmem:[%s1 + $0x8] sm:$0xff]
    %v25 = vld [vmem:[%s1 + $0x10] sm:$0xff]
    %v26 = vld [vmem:[%s1 + $0x18] sm:$0xff]
    %v27 = vld [vmem:[%s1 + $0x20] sm:$0xff]
    %v28 = vld [vmem:[%s1 + $0x28] sm:$0xff]
    %v29 = vld [vmem:[%s1 + $0x30] sm:$0xff]
    %v30 = vld [vmem:[%s1 + $0x38] sm:$0xff]
    %v31 = vld [vmem:[%s1 + $0x40] sm:$0xff]
    %v32 = vld [vmem:[%s1 + $0x48] sm:$0xff]
    %v33 = vld [vmem:[%s1 + $0x50] sm:$0xff]
    %v34 = vld [vmem:[%s1 + $0x58] sm:$0xff]
    %v35 = vld [vmem:[%s1 + $0x60] sm:$0xff]
    %v36 = vld [vmem:[%s1 + $0x68] sm:$0xff]
    %v37 = vld [vmem:[%s1 + $0x70] sm:$0xff]
    %v38 = vld [vmem:[%s1 + $0x78] sm:$0xff]
    %v39 = vld [vmem:[%s1 + $0x80] sm:$0xff]
    %v40 = vld [vmem:[%s1 + $0x88] sm:$0xff]
    %v41 = vld [vmem:[%s1 + $0x90] sm:$0xff]
    %v42 = vld [vmem:[%s1 + $0x98] sm:$0xff]
    %v43 = vld [vmem:[%s1 + $0xa0] sm:$0xff]
    %v44 = vld [vmem:[%s1 + $0xa8] sm:$0xff]
    %v45 = vld [vmem:[%s1 + $0xb0] sm:$0xff]
    %v46 = vld [vmem:[%s1 + $0xb8] sm:$0xff]
    %v47 = vld [vmem:[%s1 + $0xc0] sm:$0xff]
    %v48 = vld [vmem:[%s1 + $0xc8] sm:$0xff]
    %v49 = vld [vmem:[%s1 + $0xd0] sm:$0xff]
    %v50 = vld [vmem:[%s1 + $0xd8] sm:$0xff]
    %v51 = vld [vmem:[%s1 + $0xe0] sm:$0xff]
    %v52 = vld [vmem:[%s1 + $0xe8] sm:$0xff]
    %v53 = vld [vmem:[%s1 + $0xf0] sm:$0xff]
    %v54 = vld [vmem:[%s1 + $0xf8] sm:$0xff]
    %v55 = vld [vmem:[%s2] sm:$0x3]
    %v56 = vld [vmem:[%s3] sm:$0xff]
    %v57 = vld [vmem:[%s3 + $0x8] sm:$0xff]
    %v58 = vld [vmem:[%s3 + $0x10] sm:$0xff]
    %v59 = vld [vmem:[%s3 + $0x18] sm:$0xff]
    %v60 = vld [vmem:[%s3 + $0x20] sm:$0xff]
    %v61 = vld [vmem:[%s3 + $0x28] sm:$0xff]
    %v62 = vld [vmem:[%s3 + $0x30] sm:$0xff]
    %v63 = vld [vmem:[%s3 + $0x38] sm:$0xff]
    %v64 = vld [vmem:[%s3 + $0x40] sm:$0xff]
    %v65 = vld [vmem:[%s3 + $0x48] sm:$0xff]
    %v66 = vld [vmem:[%s3 + $0x50] sm:$0xff]
    %v67 = vld [vmem:[%s3 + $0x58] sm:$0xff]
    %v68 = vld [vmem:[%s3 + $0x60] sm:$0xff]
    %v69 = vld [vmem:[%s3 + $0x68] sm:$0xff]
    %v70 = vld [vmem:[%s3 + $0x70] sm:$0xff]
    %v71 = vld [vmem:[%s3 + $0x78] sm:$0xff]
    %v72 = vld [vmem:[%s3 + $0x80] sm:$0xff]
    %v73 = vld [vmem:[%s3 + $0x88] sm:$0xff]
    %v74 = vld [vmem:[%s3 + $0x90] sm:$0xff]
    %v75 = vld [vmem:[%s3 + $0x98] sm:$0xff]
    %v76 = vld [vmem:[%s3 + $0xa0] sm:$0xff]
    %v77 = vld [vmem:[%s3 + $0xa8] sm:$0xff]
    %v78 = vld [vmem:[%s3 + $0xb0] sm:$0xff]
    %v79 = vld [vmem:[%s3 + $0xb8] sm:$0xff]
    %v80 = vld [vmem:[%s3 + $0xc0] sm:$0xff]
    %v81 = vld [vmem:[%s3 + $0xc8] sm:$0xff]
    %v82 = vld [vmem:[%s3 + $0xd0] sm:$0xff]
    %v83 = vld [vmem:[%s3 + $0xd8] sm:$0xff]
    %v84 = vld [vmem:[%s3 + $0xe0] sm:$0xff]
    %v85 = vld [vmem:[%s3 + $0xe8] sm:$0xff]
    %v86 = vld [vmem:[%s3 + $0xf0] sm:$0xff]
    %v87 = vld [vmem:[%s3 + $0xf8] sm:$0xff]
    %v88 = vld [vmem:[#allocation2] sm:$0x1]
    %v89 = vld [vmem:[%s0] sm:$0x1]
    %v91 = vlaneseq
    %v92 = vshrl.u32 %v91, 7
    %v93 = vsub.s32 0, %v92
    %v94 = vrot.slane %v55, %v93
    %v95 = vlaneseq
    %v96 = vshrl.u32 %v95, 7
    %v97 = vsub.s32 1, %v96
    %v98 = vrot.slane %v55, %v97
    %v101 = vand.u32 %v24, 4294901760
    %102 = vmatprep.subr.mxu0 %v101
    %v103 = vand.u32 %v23, 4294901760
    %104 = vmatpush1.msra.mxu0 %v103
    %v105 = vand.u32 %v26, 4294901760
    %106 = vmatprep.subr.mxu0 %v105
    %v107 = vand.u32 %v25, 4294901760
    %108 = vmatpush1.msra.mxu0 %v107
    %v109 = vand.u32 %v28, 4294901760
    %110 = vmatprep.subr.mxu0 %v109
    %v111 = vand.u32 %v27, 4294901760
    %112 = vmatpush1.msra.mxu0 %v111
    %v113 = vand.u32 %v30, 4294901760
    %114 = vmatprep.subr.mxu0 %v113
    %v115 = vand.u32 %v29, 4294901760
    %116 = vmatpush1.msra.mxu0 %v115
    %v117 = vand.u32 %v32, 4294901760
    %118 = vmatprep.subr.mxu0 %v117
    %v119 = vand.u32 %v31, 4294901760
    %120 = vmatpush1.msra.mxu0 %v119
    %v121 = vand.u32 %v34, 4294901760
    %122 = vmatprep.subr.mxu0 %v121
    %v123 = vand.u32 %v33, 4294901760
    %124 = vmatpush1.msra.mxu0 %v123
    %v125 = vand.u32 %v36, 4294901760
    %126 = vmatprep.subr.mxu0 %v125
    %v127 = vand.u32 %v35, 4294901760
    %128 = vmatpush1.msra.mxu0 %v127
    %v129 = vand.u32 %v38, 4294901760
    %130 = vmatprep.subr.mxu0 %v129
    %v131 = vand.u32 %v37, 4294901760
    %132 = vmatpush1.msra.mxu0 %v131
    %v133 = vand.u32 %v40, 4294901760
    %134 = vmatprep.subr.mxu0 %v133
    %v135 = vand.u32 %v39, 4294901760
    %136 = vmatpush1.msra.mxu0 %v135
    %v137 = vand.u32 %v42, 4294901760
    %138 = vmatprep.subr.mxu0 %v137
    %v139 = vand.u32 %v41, 4294901760
    %140 = vmatpush1.msra.mxu0 %v139
    %v141 = vand.u32 %v44, 4294901760
    %142 = vmatprep.subr.mxu0 %v141
    %v143 = vand.u32 %v43, 4294901760
    %144 = vmatpush1.msra.mxu0 %v143
    %v145 = vand.u32 %v46, 4294901760
    %146 = vmatprep.subr.mxu0 %v145
    %v147 = vand.u32 %v45, 4294901760
    %148 = vmatpush1.msra.mxu0 %v147
    %v149 = vand.u32 %v48, 4294901760
    %150 = vmatprep.subr.mxu0 %v149
    %v151 = vand.u32 %v47, 4294901760
    %152 = vmatpush1.msra.mxu0 %v151
    %v153 = vand.u32 %v50, 4294901760
    %154 = vmatprep.subr.mxu0 %v153
    %v155 = vand.u32 %v49, 4294901760
    %156 = vmatpush1.msra.mxu0 %v155
    %v157 = vand.u32 %v52, 4294901760
    %158 = vmatprep.subr.mxu0 %v157
    %v159 = vand.u32 %v51, 4294901760
    %160 = vmatpush1.msra.mxu0 %v159
    %v161 = vand.u32 %v54, 4294901760
    %162 = vmatprep.subr.mxu0 %v161
    %v163 = vand.u32 %v53, 4294901760
    %164 = vmatpush1.msra.mxu0 %v163
    %165 = vmatprep.subr.mxu0 0.0
    %166 = vmatpush1.msra.mxu0 0.0
    %167 = vmatprep.subr.mxu0 0.0
    %168 = vmatpush1.msra.mxu0 0.0
    %169 = vmatprep.subr.mxu0 0.0
    %170 = vmatpush1.msra.mxu0 0.0
    %171 = vmatprep.subr.mxu0 0.0
    %172 = vmatpush1.msra.mxu0 0.0
    %173 = vmatprep.subr.mxu0 0.0
    %174 = vmatpush1.msra.mxu0 0.0
    %175 = vmatprep.subr.mxu0 0.0
    %176 = vmatpush1.msra.mxu0 0.0
    %177 = vmatprep.subr.mxu0 0.0
    %178 = vmatpush1.msra.mxu0 0.0
    %179 = vmatprep.subr.mxu0 0.0
    %180 = vmatpush1.msra.mxu0 0.0
    %181 = vmatprep.subr.mxu0 0.0
    %182 = vmatpush1.msra.mxu0 0.0
    %183 = vmatprep.subr.mxu0 0.0
    %184 = vmatpush1.msra.mxu0 0.0
    %185 = vmatprep.subr.mxu0 0.0
    %186 = vmatpush1.msra.mxu0 0.0
    %187 = vmatprep.subr.mxu0 0.0
    %188 = vmatpush1.msra.mxu0 0.0
    %189 = vmatprep.subr.mxu0 0.0
    %190 = vmatpush1.msra.mxu0 0.0
    %191 = vmatprep.subr.mxu0 0.0
    %192 = vmatpush1.msra.mxu0 0.0
    %193 = vmatprep.subr.mxu0 0.0
    %194 = vmatpush1.msra.mxu0 0.0
    %195 = vmatprep.subr.mxu0 0.0
    %196 = vmatpush1.msra.mxu0 0.0
    %197 = vmatprep.mubr.f32.mxu0 0.0
    %v198 = vand.u32 %v89, 4294901760
    %v199 = vsub.f32 %v89, %v198
    %v200 = vand.u32 %v199, 4294901760
    %v201 = vsub.f32 %v199, %v200
    %v202 = vand.u32 %v201, 4294901760
    %203 = vmatmul.mubr.f32.gmra.mrb[0].mxu0 %v202
    %v204 = vpop.f32.mrb[0].mxu0
    %v205 = vadd.f32 %v94, %v204
    %v206 = vpop.f32.mrb[0].mxu0
    %v207 = vadd.f32 %v98, %v206
    %208 = vdwg.mxu0
    %v209 = vand.u32 %v24, 4294901760
    %v210 = vsub.f32 %v24, %v209
    %v211 = vand.u32 %v210, 4294901760
    %v212 = vsub.f32 %v210, %v211
    %v213 = vand.u32 %v212, 4294901760
    %214 = vmatprep.subr.mxu0 %v213
    %v215 = vand.u32 %v23, 4294901760
    %v216 = vsub.f32 %v23, %v215
    %v217 = vand.u32 %v216, 4294901760
    %v218 = vsub.f32 %v216, %v217
    %v219 = vand.u32 %v218, 4294901760
    %220 = vmatpush1.msra.mxu0 %v219
    %v221 = vand.u32 %v26, 4294901760
    %v222 = vsub.f32 %v26, %v221
    %v223 = vand.u32 %v222, 4294901760
    %v224 = vsub.f32 %v222, %v223
    %v225 = vand.u32 %v224, 4294901760
    %226 = vmatprep.subr.mxu0 %v225
    %v227 = vand.u32 %v25, 4294901760
    %v228 = vsub.f32 %v25, %v227
    %v229 = vand.u32 %v228, 4294901760
    %v230 = vsub.f32 %v228, %v229
    %v231 = vand.u32 %v230, 4294901760
    %232 = vmatpush1.msra.mxu0 %v231
    %v233 = vand.u32 %v28, 4294901760
    %v234 = vsub.f32 %v28, %v233
    %v235 = vand.u32 %v234, 4294901760
    %v236 = vsub.f32 %v234, %v235
    %v237 = vand.u32 %v236, 4294901760
    %238 = vmatprep.subr.mxu0 %v237
    %v239 = vand.u32 %v27, 4294901760
    %v240 = vsub.f32 %v27, %v239
    %v241 = vand.u32 %v240, 4294901760
    %v242 = vsub.f32 %v240, %v241
    %v243 = vand.u32 %v242, 4294901760
    %244 = vmatpush1.msra.mxu0 %v243
    %v245 = vand.u32 %v30, 4294901760
    %v246 = vsub.f32 %v30, %v245
    %v247 = vand.u32 %v246, 4294901760
    %v248 = vsub.f32 %v246, %v247
    %v249 = vand.u32 %v248, 4294901760
    %250 = vmatprep.subr.mxu0 %v249
    %v251 = vand.u32 %v29, 4294901760
    %v252 = vsub.f32 %v29, %v251
    %v253 = vand.u32 %v252, 4294901760
    %v254 = vsub.f32 %v252, %v253
    %v255 = vand.u32 %v254, 4294901760
    %256 = vmatpush1.msra.mxu0 %v255
    %v257 = vand.u32 %v32, 4294901760
    %v258 = vsub.f32 %v32, %v257
    %v259 = vand.u32 %v258, 4294901760
    %v260 = vsub.f32 %v258, %v259
    %v261 = vand.u32 %v260, 4294901760
    %262 = vmatprep.subr.mxu0 %v261
    %v263 = vand.u32 %v31, 4294901760
    %v264 = vsub.f32 %v31, %v263
    %v265 = vand.u32 %v264, 4294901760
    %v266 = vsub.f32 %v264, %v265
    %v267 = vand.u32 %v266, 4294901760
    %268 = vmatpush1.msra.mxu0 %v267
    %v269 = vand.u32 %v34, 4294901760
    %v270 = vsub.f32 %v34, %v269
    %v271 = vand.u32 %v270, 4294901760
    %v272 = vsub.f32 %v270, %v271
    %v273 = vand.u32 %v272, 4294901760
    %274 = vmatprep.subr.mxu0 %v273
    %v275 = vand.u32 %v33, 4294901760
    %v276 = vsub.f32 %v33, %v275
    %v277 = vand.u32 %v276, 4294901760
    %v278 = vsub.f32 %v276, %v277
    %v279 = vand.u32 %v278, 4294901760
    %280 = vmatpush1.msra.mxu0 %v279
    %v281 = vand.u32 %v36, 4294901760
    %v282 = vsub.f32 %v36, %v281
    %v283 = vand.u32 %v282, 4294901760
    %v284 = vsub.f32 %v282, %v283
    %v285 = vand.u32 %v284, 4294901760
    %286 = vmatprep.subr.mxu0 %v285
    %v287 = vand.u32 %v35, 4294901760
    %v288 = vsub.f32 %v35, %v287
    %v289 = vand.u32 %v288, 4294901760
    %v290 = vsub.f32 %v288, %v289
    %v291 = vand.u32 %v290, 4294901760
    %292 = vmatpush1.msra.mxu0 %v291
    %v293 = vand.u32 %v38, 4294901760
    %v294 = vsub.f32 %v38, %v293
    %v295 = vand.u32 %v294, 4294901760
    %v296 = vsub.f32 %v294, %v295
    %v297 = vand.u32 %v296, 4294901760
    %298 = vmatprep.subr.mxu0 %v297
    %v299 = vand.u32 %v37, 4294901760
    %v300 = vsub.f32 %v37, %v299
    %v301 = vand.u32 %v300, 4294901760
    %v302 = vsub.f32 %v300, %v301
    %v303 = vand.u32 %v302, 4294901760
    %304 = vmatpush1.msra.mxu0 %v303
    %v305 = vand.u32 %v40, 4294901760
    %v306 = vsub.f32 %v40, %v305
    %v307 = vand.u32 %v306, 4294901760
    %v308 = vsub.f32 %v306, %v307
    %v309 = vand.u32 %v308, 4294901760
    %310 = vmatprep.subr.mxu0 %v309
    %v311 = vand.u32 %v39, 4294901760
    %v312 = vsub.f32 %v39, %v311
    %v313 = vand.u32 %v312, 4294901760
    %v314 = vsub.f32 %v312, %v313
    %v315 = vand.u32 %v314, 4294901760
    %316 = vmatpush1.msra.mxu0 %v315
    %v317 = vand.u32 %v42, 4294901760
    %v318 = vsub.f32 %v42, %v317
    %v319 = vand.u32 %v318, 4294901760
    %v320 = vsub.f32 %v318, %v319
    %v321 = vand.u32 %v320, 4294901760
    %322 = vmatprep.subr.mxu0 %v321
    %v323 = vand.u32 %v41, 4294901760
    %v324 = vsub.f32 %v41, %v323
    %v325 = vand.u32 %v324, 4294901760
    %v326 = vsub.f32 %v324, %v325
    %v327 = vand.u32 %v326, 4294901760
    %328 = vmatpush1.msra.mxu0 %v327
    %v329 = vand.u32 %v44, 4294901760
    %v330 = vsub.f32 %v44, %v329
    %v331 = vand.u32 %v330, 4294901760
    %v332 = vsub.f32 %v330, %v331
    %v333 = vand.u32 %v332, 4294901760
    %334 = vmatprep.subr.mxu0 %v333
    %v335 = vand.u32 %v43, 4294901760
    %v336 = vsub.f32 %v43, %v335
    %v337 = vand.u32 %v336, 4294901760
    %v338 = vsub.f32 %v336, %v337
    %v339 = vand.u32 %v338, 4294901760
    %340 = vmatpush1.msra.mxu0 %v339
    %v341 = vand.u32 %v46, 4294901760
    %v342 = vsub.f32 %v46, %v341
    %v343 = vand.u32 %v342, 4294901760
    %v344 = vsub.f32 %v342, %v343
    %v345 = vand.u32 %v344, 4294901760
    %346 = vmatprep.subr.mxu0 %v345
    %v347 = vand.u32 %v45, 4294901760
    %v348 = vsub.f32 %v45, %v347
    %v349 = vand.u32 %v348, 4294901760
    %v350 = vsub.f32 %v348, %v349
    %v351 = vand.u32 %v350, 4294901760
    %352 = vmatpush1.msra.mxu0 %v351
    %v353 = vand.u32 %v48, 4294901760
    %v354 = vsub.f32 %v48, %v353
    %v355 = vand.u32 %v354, 4294901760
    %v356 = vsub.f32 %v354, %v355
    %v357 = vand.u32 %v356, 4294901760
    %358 = vmatprep.subr.mxu0 %v357
    %v359 = vand.u32 %v47, 4294901760
    %v360 = vsub.f32 %v47, %v359
    %v361 = vand.u32 %v360, 4294901760
    %v362 = vsub.f32 %v360, %v361
    %v363 = vand.u32 %v362, 4294901760
    %364 = vmatpush1.msra.mxu0 %v363
    %v365 = vand.u32 %v50, 4294901760
    %v366 = vsub.f32 %v50, %v365
    %v367 = vand.u32 %v366, 4294901760
    %v368 = vsub.f32 %v366, %v367
    %v369 = vand.u32 %v368, 4294901760
    %370 = vmatprep.subr.mxu0 %v369
    %v371 = vand.u32 %v49, 4294901760
    %v372 = vsub.f32 %v49, %v371
    %v373 = vand.u32 %v372, 4294901760
    %v374 = vsub.f32 %v372, %v373
    %v375 = vand.u32 %v374, 4294901760
    %376 = vmatpush1.msra.mxu0 %v375
    %v377 = vand.u32 %v52, 4294901760
    %v378 = vsub.f32 %v52, %v377
    %v379 = vand.u32 %v378, 4294901760
    %v380 = vsub.f32 %v378, %v379
    %v381 = vand.u32 %v380, 4294901760
    %382 = vmatprep.subr.mxu0 %v381
    %v383 = vand.u32 %v51, 4294901760
    %v384 = vsub.f32 %v51, %v383
    %v385 = vand.u32 %v384, 4294901760
    %v386 = vsub.f32 %v384, %v385
    %v387 = vand.u32 %v386, 4294901760
    %388 = vmatpush1.msra.mxu0 %v387
    %v389 = vand.u32 %v54, 4294901760
    %v390 = vsub.f32 %v54, %v389
    %v391 = vand.u32 %v390, 4294901760
    %v392 = vsub.f32 %v390, %v391
    %v393 = vand.u32 %v392, 4294901760
    %394 = vmatprep.subr.mxu0 %v393
    %v395 = vand.u32 %v53, 4294901760
    %v396 = vsub.f32 %v53, %v395
    %v397 = vand.u32 %v396, 4294901760
    %v398 = vsub.f32 %v396, %v397
    %v399 = vand.u32 %v398, 4294901760
    %400 = vmatpush1.msra.mxu0 %v399
    %401 = vmatprep.subr.mxu0 0.0
    %402 = vmatpush1.msra.mxu0 0.0
    %403 = vmatprep.subr.mxu0 0.0
    %404 = vmatpush1.msra.mxu0 0.0
    %405 = vmatprep.subr.mxu0 0.0
    %406 = vmatpush1.msra.mxu0 0.0
    %407 = vmatprep.subr.mxu0 0.0
    %408 = vmatpush1.msra.mxu0 0.0
    %409 = vmatprep.subr.mxu0 0.0
    %410 = vmatpush1.msra.mxu0 0.0
    %411 = vmatprep.subr.mxu0 0.0
    %412 = vmatpush1.msra.mxu0 0.0
    %413 = vmatprep.subr.mxu0 0.0
    %414 = vmatpush1.msra.mxu0 0.0
    %415 = vmatprep.subr.mxu0 0.0
    %416 = vmatpush1.msra.mxu0 0.0
    %417 = vmatprep.subr.mxu0 0.0
    %418 = vmatpush1.msra.mxu0 0.0
    %419 = vmatprep.subr.mxu0 0.0
    %420 = vmatpush1.msra.mxu0 0.0
    %421 = vmatprep.subr.mxu0 0.0
    %422 = vmatpush1.msra.mxu0 0.0
    %423 = vmatprep.subr.mxu0 0.0
    %424 = vmatpush1.msra.mxu0 0.0
    %425 = vmatprep.subr.mxu0 0.0
    %426 = vmatpush1.msra.mxu0 0.0
    %427 = vmatprep.subr.mxu0 0.0
    %428 = vmatpush1.msra.mxu0 0.0
    %429 = vmatprep.subr.mxu0 0.0
    %430 = vmatpush1.msra.mxu0 0.0
    %431 = vmatprep.subr.mxu0 0.0
    %432 = vmatpush1.msra.mxu0 0.0
    %433 = vmatprep.mubr.f32.mxu0 0.0
    %v434 = vand.u32 %v89, 4294901760
    %435 = vmatmul.mubr.f32.gmra.mrb[0].mxu0 %v434
    %v436 = vpop.f32.mrb[0].mxu0
    %v437 = vadd.f32 %v205, %v436
    %v438 = vpop.f32.mrb[0].mxu0
    %v439 = vadd.f32 %v207, %v438
    %440 = vdwg.mxu0
    %v441 = vand.u32 %v24, 4294901760
    %v442 = vsub.f32 %v24, %v441
    %443 = vmatprep.subr.mxu0 %v442
    %v444 = vand.u32 %v23, 4294901760
    %v445 = vsub.f32 %v23, %v444
    %446 = vmatpush1.msra.mxu0 %v445
    %v447 = vand.u32 %v26, 4294901760
    %v448 = vsub.f32 %v26, %v447
    %449 = vmatprep.subr.mxu0 %v448
    %v450 = vand.u32 %v25, 4294901760
    %v451 = vsub.f32 %v25, %v450
    %452 = vmatpush1.msra.mxu0 %v451
    %v453 = vand.u32 %v28, 4294901760
    %v454 = vsub.f32 %v28, %v453
    %455 = vmatprep.subr.mxu0 %v454
    %v456 = vand.u32 %v27, 4294901760
    %v457 = vsub.f32 %v27, %v456
    %458 = vmatpush1.msra.mxu0 %v457
    %v459 = vand.u32 %v30, 4294901760
    %v460 = vsub.f32 %v30, %v459
    %461 = vmatprep.subr.mxu0 %v460
    %v462 = vand.u32 %v29, 4294901760
    %v463 = vsub.f32 %v29, %v462
    %464 = vmatpush1.msra.mxu0 %v463
    %v465 = vand.u32 %v32, 4294901760
    %v466 = vsub.f32 %v32, %v465
    %467 = vmatprep.subr.mxu0 %v466
    %v468 = vand.u32 %v31, 4294901760
    %v469 = vsub.f32 %v31, %v468
    %470 = vmatpush1.msra.mxu0 %v469
    %v471 = vand.u32 %v34, 4294901760
    %v472 = vsub.f32 %v34, %v471
    %473 = vmatprep.subr.mxu0 %v472
    %v474 = vand.u32 %v33, 4294901760
    %v475 = vsub.f32 %v33, %v474
    %476 = vmatpush1.msra.mxu0 %v475
    %v477 = vand.u32 %v36, 4294901760
    %v478 = vsub.f32 %v36, %v477
    %479 = vmatprep.subr.mxu0 %v478
    %v480 = vand.u32 %v35, 4294901760
    %v481 = vsub.f32 %v35, %v480
    %482 = vmatpush1.msra.mxu0 %v481
    %v483 = vand.u32 %v38, 4294901760
    %v484 = vsub.f32 %v38, %v483
    %485 = vmatprep.subr.mxu0 %v484
    %v486 = vand.u32 %v37, 4294901760
    %v487 = vsub.f32 %v37, %v486
    %488 = vmatpush1.msra.mxu0 %v487
    %v489 = vand.u32 %v40, 4294901760
    %v490 = vsub.f32 %v40, %v489
    %491 = vmatprep.subr.mxu0 %v490
    %v492 = vand.u32 %v39, 4294901760
    %v493 = vsub.f32 %v39, %v492
    %494 = vmatpush1.msra.mxu0 %v493
    %v495 = vand.u32 %v42, 4294901760
    %v496 = vsub.f32 %v42, %v495
    %497 = vmatprep.subr.mxu0 %v496
    %v498 = vand.u32 %v41, 4294901760
    %v499 = vsub.f32 %v41, %v498
    %500 = vmatpush1.msra.mxu0 %v499
    %v501 = vand.u32 %v44, 4294901760
    %v502 = vsub.f32 %v44, %v501
    %503 = vmatprep.subr.mxu0 %v502
    %v504 = vand.u32 %v43, 4294901760
    %v505 = vsub.f32 %v43, %v504
    %506 = vmatpush1.msra.mxu0 %v505
    %v507 = vand.u32 %v46, 4294901760
    %v508 = vsub.f32 %v46, %v507
    %509 = vmatprep.subr.mxu0 %v508
    %v510 = vand.u32 %v45, 4294901760
    %v511 = vsub.f32 %v45, %v510
    %512 = vmatpush1.msra.mxu0 %v511
    %v513 = vand.u32 %v48, 4294901760
    %v514 = vsub.f32 %v48, %v513
    %515 = vmatprep.subr.mxu0 %v514
    %v516 = vand.u32 %v47, 4294901760
    %v517 = vsub.f32 %v47, %v516
    %518 = vmatpush1.msra.mxu0 %v517
    %v519 = vand.u32 %v50, 4294901760
    %v520 = vsub.f32 %v50, %v519
    %521 = vmatprep.subr.mxu0 %v520
    %v522 = vand.u32 %v49, 4294901760
    %v523 = vsub.f32 %v49, %v522
    %524 = vmatpush1.msra.mxu0 %v523
    %v525 = vand.u32 %v52, 4294901760
    %v526 = vsub.f32 %v52, %v525
    %527 = vmatprep.subr.mxu0 %v526
    %v528 = vand.u32 %v51, 4294901760
    %v529 = vsub.f32 %v51, %v528
    %530 = vmatpush1.msra.mxu0 %v529
    %v531 = vand.u32 %v54, 4294901760
    %v532 = vsub.f32 %v54, %v531
    %533 = vmatprep.subr.mxu0 %v532
    %v534 = vand.u32 %v53, 4294901760
    %v535 = vsub.f32 %v53, %v534
    %536 = vmatpush1.msra.mxu0 %v535
    %537 = vmatprep.subr.mxu0 0.0
    %538 = vmatpush1.msra.mxu0 0.0
    %539 = vmatprep.subr.mxu0 0.0
    %540 = vmatpush1.msra.mxu0 0.0
    %541 = vmatprep.subr.mxu0 0.0
    %542 = vmatpush1.msra.mxu0 0.0
    %543 = vmatprep.subr.mxu0 0.0
    %544 = vmatpush1.msra.mxu0 0.0
    %545 = vmatprep.subr.mxu0 0.0
    %546 = vmatpush1.msra.mxu0 0.0
    %547 = vmatprep.subr.mxu0 0.0
    %548 = vmatpush1.msra.mxu0 0.0
    %549 = vmatprep.subr.mxu0 0.0
    %550 = vmatpush1.msra.mxu0 0.0
    %551 = vmatprep.subr.mxu0 0.0
    %552 = vmatpush1.msra.mxu0 0.0
    %553 = vmatprep.subr.mxu0 0.0
    %554 = vmatpush1.msra.mxu0 0.0
    %555 = vmatprep.subr.mxu0 0.0
    %556 = vmatpush1.msra.mxu0 0.0
    %557 = vmatprep.subr.mxu0 0.0
    %558 = vmatpush1.msra.mxu0 0.0
    %559 = vmatprep.subr.mxu0 0.0
    %560 = vmatpush1.msra.mxu0 0.0
    %561 = vmatprep.subr.mxu0 0.0
    %562 = vmatpush1.msra.mxu0 0.0
    %563 = vmatprep.subr.mxu0 0.0
    %564 = vmatpush1.msra.mxu0 0.0
    %565 = vmatprep.subr.mxu0 0.0
    %566 = vmatpush1.msra.mxu0 0.0
    %567 = vmatprep.subr.mxu0 0.0
    %568 = vmatpush1.msra.mxu0 0.0
    %569 = vmatprep.mubr.f32.mxu0 0.0
    %v570 = vand.u32 %v89, 4294901760
    %v571 = vsub.f32 %v89, %v570
    %572 = vmatmul.mubr.f32.gmra.mrb[0].mxu0 %v571
    %v573 = vpop.f32.mrb[0].mxu0
    %v574 = vadd.f32 %v437, %v573
    %v575 = vpop.f32.mrb[0].mxu0
    %v576 = vadd.f32 %v439, %v575
    %577 = vdwg.mxu0
    %v578 = vand.u32 %v24, 4294901760
    %579 = vmatprep.subr.mxu0 %v578
    %v580 = vand.u32 %v23, 4294901760
    %581 = vmatpush1.msra.mxu0 %v580
    %v582 = vand.u32 %v26, 4294901760
    %583 = vmatprep.subr.mxu0 %v582
    %v584 = vand.u32 %v25, 4294901760
    %585 = vmatpush1.msra.mxu0 %v584
    %v586 = vand.u32 %v28, 4294901760
    %587 = vmatprep.subr.mxu0 %v586
    %v588 = vand.u32 %v27, 4294901760
    %589 = vmatpush1.msra.mxu0 %v588
    %v590 = vand.u32 %v30, 4294901760
    %591 = vmatprep.subr.mxu0 %v590
    %v592 = vand.u32 %v29, 4294901760
    %593 = vmatpush1.msra.mxu0 %v592
    %v594 = vand.u32 %v32, 4294901760
    %595 = vmatprep.subr.mxu0 %v594
    %v596 = vand.u32 %v31, 4294901760
    %597 = vmatpush1.msra.mxu0 %v596
    %v598 = vand.u32 %v34, 4294901760
    %599 = vmatprep.subr.mxu0 %v598
    %v600 = vand.u32 %v33, 4294901760
    %601 = vmatpush1.msra.mxu0 %v600
    %v602 = vand.u32 %v36, 4294901760
    %603 = vmatprep.subr.mxu0 %v602
    %v604 = vand.u32 %v35, 4294901760
    %605 = vmatpush1.msra.mxu0 %v604
    %v606 = vand.u32 %v38, 4294901760
    %607 = vmatprep.subr.mxu0 %v606
    %v608 = vand.u32 %v37, 4294901760
    %609 = vmatpush1.msra.mxu0 %v608
    %v610 = vand.u32 %v40, 4294901760
    %611 = vmatprep.subr.mxu0 %v610
    %v612 = vand.u32 %v39, 4294901760
    %613 = vmatpush1.msra.mxu0 %v612
    %v614 = vand.u32 %v42, 4294901760
    %615 = vmatprep.subr.mxu0 %v614
    %v616 = vand.u32 %v41, 4294901760
    %617 = vmatpush1.msra.mxu0 %v616
    %v618 = vand.u32 %v44, 4294901760
    %619 = vmatprep.subr.mxu0 %v618
    %v620 = vand.u32 %v43, 4294901760
    %621 = vmatpush1.msra.mxu0 %v620
    %v622 = vand.u32 %v46, 4294901760
    %623 = vmatprep.subr.mxu0 %v622
    %v624 = vand.u32 %v45, 4294901760
    %625 = vmatpush1.msra.mxu0 %v624
    %v626 = vand.u32 %v48, 4294901760
    %627 = vmatprep.subr.mxu0 %v626
    %v628 = vand.u32 %v47, 4294901760
    %629 = vmatpush1.msra.mxu0 %v628
    %v630 = vand.u32 %v50, 4294901760
    %631 = vmatprep.subr.mxu0 %v630
    %v632 = vand.u32 %v49, 4294901760
    %633 = vmatpush1.msra.mxu0 %v632
    %v634 = vand.u32 %v52, 4294901760
    %635 = vmatprep.subr.mxu0 %v634
    %v636 = vand.u32 %v51, 4294901760
    %637 = vmatpush1.msra.mxu0 %v636
    %v638 = vand.u32 %v54, 4294901760
    %639 = vmatprep.subr.mxu0 %v638
    %v640 = vand.u32 %v53, 4294901760
    %641 = vmatpush1.msra.mxu0 %v640
    %642 = vmatprep.subr.mxu0 0.0
    %643 = vmatpush1.msra.mxu0 0.0
    %644 = vmatprep.subr.mxu0 0.0
    %645 = vmatpush1.msra.mxu0 0.0
    %646 = vmatprep.subr.mxu0 0.0
    %647 = vmatpush1.msra.mxu0 0.0
    %648 = vmatprep.subr.mxu0 0.0
    %649 = vmatpush1.msra.mxu0 0.0
    %650 = vmatprep.subr.mxu0 0.0
    %651 = vmatpush1.msra.mxu0 0.0
    %652 = vmatprep.subr.mxu0 0.0
    %653 = vmatpush1.msra.mxu0 0.0
    %654 = vmatprep.subr.mxu0 0.0
    %655 = vmatpush1.msra.mxu0 0.0
    %656 = vmatprep.subr.mxu0 0.0
    %657 = vmatpush1.msra.mxu0 0.0
    %658 = vmatprep.subr.mxu0 0.0
    %659 = vmatpush1.msra.mxu0 0.0
    %660 = vmatprep.subr.mxu0 0.0
    %661 = vmatpush1.msra.mxu0 0.0
    %662 = vmatprep.subr.mxu0 0.0
    %663 = vmatpush1.msra.mxu0 0.0
    %664 = vmatprep.subr.mxu0 0.0
    %665 = vmatpush1.msra.mxu0 0.0
    %666 = vmatprep.subr.mxu0 0.0
    %667 = vmatpush1.msra.mxu0 0.0
    %668 = vmatprep.subr.mxu0 0.0
    %669 = vmatpush1.msra.mxu0 0.0
    %670 = vmatprep.subr.mxu0 0.0
    %671 = vmatpush1.msra.mxu0 0.0
    %672 = vmatprep.subr.mxu0 0.0
    %673 = vmatpush1.msra.mxu0 0.0
    %674 = vmatprep.mubr.f32.mxu0 0.0
    %v675 = vand.u32 %v89, 4294901760
    %v676 = vsub.f32 %v89, %v675
    %v677 = vand.u32 %v676, 4294901760
    %678 = vmatmul.mubr.f32.gmra.mrb[0].mxu0 %v677
    %v679 = vpop.f32.mrb[0].mxu0
    %v680 = vadd.f32 %v574, %v679
    %v681 = vpop.f32.mrb[0].mxu0
    %v682 = vadd.f32 %v576, %v681
    %683 = vdwg.mxu0
    %v684 = vand.u32 %v24, 4294901760
    %v685 = vsub.f32 %v24, %v684
    %v686 = vand.u32 %v685, 4294901760
    %687 = vmatprep.subr.mxu0 %v686
    %v688 = vand.u32 %v23, 4294901760
    %v689 = vsub.f32 %v23, %v688
    %v690 = vand.u32 %v689, 4294901760
    %691 = vmatpush1.msra.mxu0 %v690
    %v692 = vand.u32 %v26, 4294901760
    %v693 = vsub.f32 %v26, %v692
    %v694 = vand.u32 %v693, 4294901760
    %695 = vmatprep.subr.mxu0 %v694
    %v696 = vand.u32 %v25, 4294901760
    %v697 = vsub.f32 %v25, %v696
    %v698 = vand.u32 %v697, 4294901760
    %699 = vmatpush1.msra.mxu0 %v698
    %v700 = vand.u32 %v28, 4294901760
    %v701 = vsub.f32 %v28, %v700
    %v702 = vand.u32 %v701, 4294901760
    %703 = vmatprep.subr.mxu0 %v702
    %v704 = vand.u32 %v27, 4294901760
    %v705 = vsub.f32 %v27, %v704
    %v706 = vand.u32 %v705, 4294901760
    %707 = vmatpush1.msra.mxu0 %v706
    %v708 = vand.u32 %v30, 4294901760
    %v709 = vsub.f32 %v30, %v708
    %v710 = vand.u32 %v709, 4294901760
    %711 = vmatprep.subr.mxu0 %v710
    %v712 = vand.u32 %v29, 4294901760
    %v713 = vsub.f32 %v29, %v712
    %v714 = vand.u32 %v713, 4294901760
    %715 = vmatpush1.msra.mxu0 %v714
    %v716 = vand.u32 %v32, 4294901760
    %v717 = vsub.f32 %v32, %v716
    %v718 = vand.u32 %v717, 4294901760
    %719 = vmatprep.subr.mxu0 %v718
    %v720 = vand.u32 %v31, 4294901760
    %v721 = vsub.f32 %v31, %v720
    %v722 = vand.u32 %v721, 4294901760
    %723 = vmatpush1.msra.mxu0 %v722
    %v724 = vand.u32 %v34, 4294901760
    %v725 = vsub.f32 %v34, %v724
    %v726 = vand.u32 %v725, 4294901760
    %727 = vmatprep.subr.mxu0 %v726
    %v728 = vand.u32 %v33, 4294901760
    %v729 = vsub.f32 %v33, %v728
    %v730 = vand.u32 %v729, 4294901760
    %731 = vmatpush1.msra.mxu0 %v730
    %v732 = vand.u32 %v36, 4294901760
    %v733 = vsub.f32 %v36, %v732
    %v734 = vand.u32 %v733, 4294901760
    %735 = vmatprep.subr.mxu0 %v734
    %v736 = vand.u32 %v35, 4294901760
    %v737 = vsub.f32 %v35, %v736
    %v738 = vand.u32 %v737, 4294901760
    %739 = vmatpush1.msra.mxu0 %v738
    %v740 = vand.u32 %v38, 4294901760
    %v741 = vsub.f32 %v38, %v740
    %v742 = vand.u32 %v741, 4294901760
    %743 = vmatprep.subr.mxu0 %v742
    %v744 = vand.u32 %v37, 4294901760
    %v745 = vsub.f32 %v37, %v744
    %v746 = vand.u32 %v745, 4294901760
    %747 = vmatpush1.msra.mxu0 %v746
    %v748 = vand.u32 %v40, 4294901760
    %v749 = vsub.f32 %v40, %v748
    %v750 = vand.u32 %v749, 4294901760
    %751 = vmatprep.subr.mxu0 %v750
    %v752 = vand.u32 %v39, 4294901760
    %v753 = vsub.f32 %v39, %v752
    %v754 = vand.u32 %v753, 4294901760
    %755 = vmatpush1.msra.mxu0 %v754
    %v756 = vand.u32 %v42, 4294901760
    %v757 = vsub.f32 %v42, %v756
    %v758 = vand.u32 %v757, 4294901760
    %759 = vmatprep.subr.mxu0 %v758
    %v760 = vand.u32 %v41, 4294901760
    %v761 = vsub.f32 %v41, %v760
    %v762 = vand.u32 %v761, 4294901760
    %763 = vmatpush1.msra.mxu0 %v762
    %v764 = vand.u32 %v44, 4294901760
    %v765 = vsub.f32 %v44, %v764
    %v766 = vand.u32 %v765, 4294901760
    %767 = vmatprep.subr.mxu0 %v766
    %v768 = vand.u32 %v43, 4294901760
    %v769 = vsub.f32 %v43, %v768
    %v770 = vand.u32 %v769, 4294901760
    %771 = vmatpush1.msra.mxu0 %v770
    %v772 = vand.u32 %v46, 4294901760
    %v773 = vsub.f32 %v46, %v772
    %v774 = vand.u32 %v773, 4294901760
    %775 = vmatprep.subr.mxu0 %v774
    %v776 = vand.u32 %v45, 4294901760
    %v777 = vsub.f32 %v45, %v776
    %v778 = vand.u32 %v777, 4294901760
    %779 = vmatpush1.msra.mxu0 %v778
    %v780 = vand.u32 %v48, 4294901760
    %v781 = vsub.f32 %v48, %v780
    %v782 = vand.u32 %v781, 4294901760
    %783 = vmatprep.subr.mxu0 %v782
    %v784 = vand.u32 %v47, 4294901760
    %v785 = vsub.f32 %v47, %v784
    %v786 = vand.u32 %v785, 4294901760
    %787 = vmatpush1.msra.mxu0 %v786
    %v788 = vand.u32 %v50, 4294901760
    %v789 = vsub.f32 %v50, %v788
    %v790 = vand.u32 %v789, 4294901760
    %791 = vmatprep.subr.mxu0 %v790
    %v792 = vand.u32 %v49, 4294901760
    %v793 = vsub.f32 %v49, %v792
    %v794 = vand.u32 %v793, 4294901760
    %795 = vmatpush1.msra.mxu0 %v794
    %v796 = vand.u32 %v52, 4294901760
    %v797 = vsub.f32 %v52, %v796
    %v798 = vand.u32 %v797, 4294901760
    %799 = vmatprep.subr.mxu0 %v798
    %v800 = vand.u32 %v51, 4294901760
    %v801 = vsub.f32 %v51, %v800
    %v802 = vand.u32 %v801, 4294901760
    %803 = vmatpush1.msra.mxu0 %v802
    %v804 = vand.u32 %v54, 4294901760
    %v805 = vsub.f32 %v54, %v804
    %v806 = vand.u32 %v805, 4294901760
    %807 = vmatprep.subr.mxu0 %v806
    %v808 = vand.u32 %v53, 4294901760
    %v809 = vsub.f32 %v53, %v808
    %v810 = vand.u32 %v809, 4294901760
    %811 = vmatpush1.msra.mxu0 %v810
    %812 = vmatprep.subr.mxu0 0.0
    %813 = vmatpush1.msra.mxu0 0.0
    %814 = vmatprep.subr.mxu0 0.0
    %815 = vmatpush1.msra.mxu0 0.0
    %816 = vmatprep.subr.mxu0 0.0
    %817 = vmatpush1.msra.mxu0 0.0
    %818 = vmatprep.subr.mxu0 0.0
    %819 = vmatpush1.msra.mxu0 0.0
    %820 = vmatprep.subr.mxu0 0.0
    %821 = vmatpush1.msra.mxu0 0.0
    %822 = vmatprep.subr.mxu0 0.0
    %823 = vmatpush1.msra.mxu0 0.0
    %824 = vmatprep.subr.mxu0 0.0
    %825 = vmatpush1.msra.mxu0 0.0
    %826 = vmatprep.subr.mxu0 0.0
    %827 = vmatpush1.msra.mxu0 0.0
    %828 = vmatprep.subr.mxu0 0.0
    %829 = vmatpush1.msra.mxu0 0.0
    %830 = vmatprep.subr.mxu0 0.0
    %831 = vmatpush1.msra.mxu0 0.0
    %832 = vmatprep.subr.mxu0 0.0
    %833 = vmatpush1.msra.mxu0 0.0
    %834 = vmatprep.subr.mxu0 0.0
    %835 = vmatpush1.msra.mxu0 0.0
    %836 = vmatprep.subr.mxu0 0.0
    %837 = vmatpush1.msra.mxu0 0.0
    %838 = vmatprep.subr.mxu0 0.0
    %839 = vmatpush1.msra.mxu0 0.0
    %840 = vmatprep.subr.mxu0 0.0
    %841 = vmatpush1.msra.mxu0 0.0
    %842 = vmatprep.subr.mxu0 0.0
    %843 = vmatpush1.msra.mxu0 0.0
    %844 = vmatprep.mubr.f32.mxu0 0.0
    %v845 = vand.u32 %v89, 4294901760
    %846 = vmatmul.mubr.f32.gmra.mrb[0].mxu0 %v845
    %v847 = vpop.f32.mrb[0].mxu0
    %v848 = vadd.f32 %v680, %v847
    %v849 = vpop.f32.mrb[0].mxu0
    %v850 = vadd.f32 %v682, %v849
    %851 = vdwg.mxu0
    %v852 = vand.u32 %v24, 4294901760
    %853 = vmatprep.subr.mxu0 %v852
    %v854 = vand.u32 %v23, 4294901760
    %855 = vmatpush1.msra.mxu0 %v854
    %v856 = vand.u32 %v26, 4294901760
    %857 = vmatprep.subr.mxu0 %v856
    %v858 = vand.u32 %v25, 4294901760
    %859 = vmatpush1.msra.mxu0 %v858
    %v860 = vand.u32 %v28, 4294901760
    %861 = vmatprep.subr.mxu0 %v860
    %v862 = vand.u32 %v27, 4294901760
    %863 = vmatpush1.msra.mxu0 %v862
    %v864 = vand.u32 %v30, 4294901760
    %865 = vmatprep.subr.mxu0 %v864
    %v866 = vand.u32 %v29, 4294901760
    %867 = vmatpush1.msra.mxu0 %v866
    %v868 = vand.u32 %v32, 4294901760
    %869 = vmatprep.subr.mxu0 %v868
    %v870 = vand.u32 %v31, 4294901760
    %871 = vmatpush1.msra.mxu0 %v870
    %v872 = vand.u32 %v34, 4294901760
    %873 = vmatprep.subr.mxu0 %v872
    %v874 = vand.u32 %v33, 4294901760
    %875 = vmatpush1.msra.mxu0 %v874
    %v876 = vand.u32 %v36, 4294901760
    %877 = vmatprep.subr.mxu0 %v876
    %v878 = vand.u32 %v35, 4294901760
    %879 = vmatpush1.msra.mxu0 %v878
    %v880 = vand.u32 %v38, 4294901760
    %881 = vmatprep.subr.mxu0 %v880
    %v882 = vand.u32 %v37, 4294901760
    %883 = vmatpush1.msra.mxu0 %v882
    %v884 = vand.u32 %v40, 4294901760
    %885 = vmatprep.subr.mxu0 %v884
    %v886 = vand.u32 %v39, 4294901760
    %887 = vmatpush1.msra.mxu0 %v886
    %v888 = vand.u32 %v42, 4294901760
    %889 = vmatprep.subr.mxu0 %v888
    %v890 = vand.u32 %v41, 4294901760
    %891 = vmatpush1.msra.mxu0 %v890
    %v892 = vand.u32 %v44, 4294901760
    %893 = vmatprep.subr.mxu0 %v892
    %v894 = vand.u32 %v43, 4294901760
    %895 = vmatpush1.msra.mxu0 %v894
    %v896 = vand.u32 %v46, 4294901760
    %897 = vmatprep.subr.mxu0 %v896
    %v898 = vand.u32 %v45, 4294901760
    %899 = vmatpush1.msra.mxu0 %v898
    %v900 = vand.u32 %v48, 4294901760
    %901 = vmatprep.subr.mxu0 %v900
    %v902 = vand.u32 %v47, 4294901760
    %903 = vmatpush1.msra.mxu0 %v902
    %v904 = vand.u32 %v50, 4294901760
    %905 = vmatprep.subr.mxu0 %v904
    %v906 = vand.u32 %v49, 4294901760
    %907 = vmatpush1.msra.mxu0 %v906
    %v908 = vand.u32 %v52, 4294901760
    %909 = vmatprep.subr.mxu0 %v908
    %v910 = vand.u32 %v51, 4294901760
    %911 = vmatpush1.msra.mxu0 %v910
    %v912 = vand.u32 %v54, 4294901760
    %913 = vmatprep.subr.mxu0 %v912
    %v914 = vand.u32 %v53, 4294901760
    %915 = vmatpush1.msra.mxu0 %v914
    %916 = vmatprep.subr.mxu0 0.0
    %917 = vmatpush1.msra.mxu0 0.0
    %918 = vmatprep.subr.mxu0 0.0
    %919 = vmatpush1.msra.mxu0 0.0
    %920 = vmatprep.subr.mxu0 0.0
    %921 = vmatpush1.msra.mxu0 0.0
    %922 = vmatprep.subr.mxu0 0.0
    %923 = vmatpush1.msra.mxu0 0.0
    %924 = vmatprep.subr.mxu0 0.0
    %925 = vmatpush1.msra.mxu0 0.0
    %926 = vmatprep.subr.mxu0 0.0
    %927 = vmatpush1.msra.mxu0 0.0
    %928 = vmatprep.subr.mxu0 0.0
    %929 = vmatpush1.msra.mxu0 0.0
    %930 = vmatprep.subr.mxu0 0.0
    %931 = vmatpush1.msra.mxu0 0.0
    %932 = vmatprep.subr.mxu0 0.0
    %933 = vmatpush1.msra.mxu0 0.0
    %934 = vmatprep.subr.mxu0 0.0
    %935 = vmatpush1.msra.mxu0 0.0
    %936 = vmatprep.subr.mxu0 0.0
    %937 = vmatpush1.msra.mxu0 0.0
    %938 = vmatprep.subr.mxu0 0.0
    %939 = vmatpush1.msra.mxu0 0.0
    %940 = vmatprep.subr.mxu0 0.0
    %941 = vmatpush1.msra.mxu0 0.0
    %942 = vmatprep.subr.mxu0 0.0
    %943 = vmatpush1.msra.mxu0 0.0
    %944 = vmatprep.subr.mxu0 0.0
    %945 = vmatpush1.msra.mxu0 0.0
    %946 = vmatprep.subr.mxu0 0.0
    %947 = vmatpush1.msra.mxu0 0.0
    %948 = vmatprep.mubr.f32.mxu0 0.0
    %v949 = vand.u32 %v89, 4294901760
    %950 = vmatmul.mubr.f32.gmra.mrb[0].mxu0 %v949
    %v951 = vpop.f32.mrb[0].mxu0
    %v952 = vadd.f32 %v848, %v951
    %v953 = vpop.f32.mrb[0].mxu0
    %v954 = vadd.f32 %v850, %v953
    %955 = vdwg.mxu0
    %v956 = vmax.f32 %v952, 0.0
    %v957 = vmax.f32 %v954, 0.0
    %959 = vset.pattern.permute.xlu0 0
    %960 = vperm.xlu0 %959, %v88
    %v961 = vpop.permute.xlu0 %960
    %v963 = vlaneseq
    %v964 = vshrl.u32 %v963, 7
    %v965 = vsub.s32 0, %v964
    %v966 = vrot.slane %v961, %v965
    %967 = vmatprep.subr.mxu0 0.0
    %v968 = vand.u32 %v56, 4294901760
    %969 = vmatpush1.msra.mxu0 %v968
    %970 = vmatprep.subr.mxu0 0.0
    %v971 = vand.u32 %v57, 4294901760
    %972 = vmatpush1.msra.mxu0 %v971
    %973 = vmatprep.subr.mxu0 0.0
    %v974 = vand.u32 %v58, 4294901760
    %975 = vmatpush1.msra.mxu0 %v974
    %976 = vmatprep.subr.mxu0 0.0
    %v977 = vand.u32 %v59, 4294901760
    %978 = vmatpush1.msra.mxu0 %v977
    %979 = vmatprep.subr.mxu0 0.0
    %v980 = vand.u32 %v60, 4294901760
    %981 = vmatpush1.msra.mxu0 %v980
    %982 = vmatprep.subr.mxu0 0.0
    %v983 = vand.u32 %v61, 4294901760
    %984 = vmatpush1.msra.mxu0 %v983
    %985 = vmatprep.subr.mxu0 0.0
    %v986 = vand.u32 %v62, 4294901760
    %987 = vmatpush1.msra.mxu0 %v986
    %988 = vmatprep.subr.mxu0 0.0
    %v989 = vand.u32 %v63, 4294901760
    %990 = vmatpush1.msra.mxu0 %v989
    %991 = vmatprep.subr.mxu0 0.0
    %v992 = vand.u32 %v64, 4294901760
    %993 = vmatpush1.msra.mxu0 %v992
    %994 = vmatprep.subr.mxu0 0.0
    %v995 = vand.u32 %v65, 4294901760
    %996 = vmatpush1.msra.mxu0 %v995
    %997 = vmatprep.subr.mxu0 0.0
    %v998 = vand.u32 %v66, 4294901760
    %999 = vmatpush1.msra.mxu0 %v998
    %1000 = vmatprep.subr.mxu0 0.0
    %v1001 = vand.u32 %v67, 4294901760
    %1002 = vmatpush1.msra.mxu0 %v1001
    %1003 = vmatprep.subr.mxu0 0.0
    %v1004 = vand.u32 %v68, 4294901760
    %1005 = vmatpush1.msra.mxu0 %v1004
    %1006 = vmatprep.subr.mxu0 0.0
    %v1007 = vand.u32 %v69, 4294901760
    %1008 = vmatpush1.msra.mxu0 %v1007
    %1009 = vmatprep.subr.mxu0 0.0
    %v1010 = vand.u32 %v70, 4294901760
    %1011 = vmatpush1.msra.mxu0 %v1010
    %1012 = vmatprep.subr.mxu0 0.0
    %v1013 = vand.u32 %v71, 4294901760
    %1014 = vmatpush1.msra.mxu0 %v1013
    %1015 = vmatprep.subr.mxu0 0.0
    %v1016 = vand.u32 %v72, 4294901760
    %1017 = vmatpush1.msra.mxu0 %v1016
    %1018 = vmatprep.subr.mxu0 0.0
    %v1019 = vand.u32 %v73, 4294901760
    %1020 = vmatpush1.msra.mxu0 %v1019
    %1021 = vmatprep.subr.mxu0 0.0
    %v1022 = vand.u32 %v74, 4294901760
    %1023 = vmatpush1.msra.mxu0 %v1022
    %1024 = vmatprep.subr.mxu0 0.0
    %v1025 = vand.u32 %v75, 4294901760
    %1026 = vmatpush1.msra.mxu0 %v1025
    %1027 = vmatprep.subr.mxu0 0.0
    %v1028 = vand.u32 %v76, 4294901760
    %1029 = vmatpush1.msra.mxu0 %v1028
    %1030 = vmatprep.subr.mxu0 0.0
    %v1031 = vand.u32 %v77, 4294901760
    %1032 = vmatpush1.msra.mxu0 %v1031
    %1033 = vmatprep.subr.mxu0 0.0
    %v1034 = vand.u32 %v78, 4294901760
    %1035 = vmatpush1.msra.mxu0 %v1034
    %1036 = vmatprep.subr.mxu0 0.0
    %v1037 = vand.u32 %v79, 4294901760
    %1038 = vmatpush1.msra.mxu0 %v1037
    %1039 = vmatprep.subr.mxu0 0.0
    %v1040 = vand.u32 %v80, 4294901760
    %1041 = vmatpush1.msra.mxu0 %v1040
    %1042 = vmatprep.subr.mxu0 0.0
    %v1043 = vand.u32 %v81, 4294901760
    %1044 = vmatpush1.msra.mxu0 %v1043
    %1045 = vmatprep.subr.mxu0 0.0
    %v1046 = vand.u32 %v82, 4294901760
    %1047 = vmatpush1.msra.mxu0 %v1046
    %1048 = vmatprep.subr.mxu0 0.0
    %v1049 = vand.u32 %v83, 4294901760
    %1050 = vmatpush1.msra.mxu0 %v1049
    %1051 = vmatprep.subr.mxu0 0.0
    %v1052 = vand.u32 %v84, 4294901760
    %1053 = vmatpush1.msra.mxu0 %v1052
    %1054 = vmatprep.subr.mxu0 0.0
    %v1055 = vand.u32 %v85, 4294901760
    %1056 = vmatpush1.msra.mxu0 %v1055
    %1057 = vmatprep.subr.mxu0 0.0
    %v1058 = vand.u32 %v86, 4294901760
    %1059 = vmatpush1.msra.mxu0 %v1058
    %1060 = vmatprep.subr.mxu0 0.0
    %v1061 = vand.u32 %v87, 4294901760
    %1062 = vmatpush1.msra.mxu0 %v1061
    %v1063 = vand.u32 %v957, 4294901760
    %v1064 = vsub.f32 %v957, %v1063
    %v1065 = vand.u32 %v1064, 4294901760
    %v1066 = vsub.f32 %v1064, %v1065
    %v1067 = vand.u32 %v1066, 4294901760
    %1068 = vmatprep.mubr.f32.mxu0 %v1067
    %v1069 = vand.u32 %v956, 4294901760
    %v1070 = vsub.f32 %v956, %v1069
    %v1071 = vand.u32 %v1070, 4294901760
    %v1072 = vsub.f32 %v1070, %v1071
    %v1073 = vand.u32 %v1072, 4294901760
    %1074 = vmatmul.mubr.f32.gmra.mrb[0].mxu0 %v1073
    %v1075 = vpop.f32.mrb[0].mxu0
    %v1076 = vadd.f32 %v966, %v1075
    %v1077 = vpop.f32.mrb[0].mxu0
    %1078 = vdwg.mxu0
    %1079 = vmatprep.subr.mxu0 0.0
    %v1080 = vand.u32 %v56, 4294901760
    %v1081 = vsub.f32 %v56, %v1080
    %v1082 = vand.u32 %v1081, 4294901760
    %v1083 = vsub.f32 %v1081, %v1082
    %v1084 = vand.u32 %v1083, 4294901760
    %1085 = vmatpush1.msra.mxu0 %v1084
    %1086 = vmatprep.subr.mxu0 0.0
    %v1087 = vand.u32 %v57, 4294901760
    %v1088 = vsub.f32 %v57, %v1087
    %v1089 = vand.u32 %v1088, 4294901760
    %v1090 = vsub.f32 %v1088, %v1089
    %v1091 = vand.u32 %v1090, 4294901760
    %1092 = vmatpush1.msra.mxu0 %v1091
    %1093 = vmatprep.subr.mxu0 0.0
    %v1094 = vand.u32 %v58, 4294901760
    %v1095 = vsub.f32 %v58, %v1094
    %v1096 = vand.u32 %v1095, 4294901760
    %v1097 = vsub.f32 %v1095, %v1096
    %v1098 = vand.u32 %v1097, 4294901760
    %1099 = vmatpush1.msra.mxu0 %v1098
    %1100 = vmatprep.subr.mxu0 0.0
    %v1101 = vand.u32 %v59, 4294901760
    %v1102 = vsub.f32 %v59, %v1101
    %v1103 = vand.u32 %v1102, 4294901760
    %v1104 = vsub.f32 %v1102, %v1103
    %v1105 = vand.u32 %v1104, 4294901760
    %1106 = vmatpush1.msra.mxu0 %v1105
    %1107 = vmatprep.subr.mxu0 0.0
    %v1108 = vand.u32 %v60, 4294901760
    %v1109 = vsub.f32 %v60, %v1108
    %v1110 = vand.u32 %v1109, 4294901760
    %v1111 = vsub.f32 %v1109, %v1110
    %v1112 = vand.u32 %v1111, 4294901760
    %1113 = vmatpush1.msra.mxu0 %v1112
    %1114 = vmatprep.subr.mxu0 0.0
    %v1115 = vand.u32 %v61, 4294901760
    %v1116 = vsub.f32 %v61, %v1115
    %v1117 = vand.u32 %v1116, 4294901760
    %v1118 = vsub.f32 %v1116, %v1117
    %v1119 = vand.u32 %v1118, 4294901760
    %1120 = vmatpush1.msra.mxu0 %v1119
    %1121 = vmatprep.subr.mxu0 0.0
    %v1122 = vand.u32 %v62, 4294901760
    %v1123 = vsub.f32 %v62, %v1122
    %v1124 = vand.u32 %v1123, 4294901760
    %v1125 = vsub.f32 %v1123, %v1124
    %v1126 = vand.u32 %v1125, 4294901760
    %1127 = vmatpush1.msra.mxu0 %v1126
    %1128 = vmatprep.subr.mxu0 0.0
    %v1129 = vand.u32 %v63, 4294901760
    %v1130 = vsub.f32 %v63, %v1129
    %v1131 = vand.u32 %v1130, 4294901760
    %v1132 = vsub.f32 %v1130, %v1131
    %v1133 = vand.u32 %v1132, 4294901760
    %1134 = vmatpush1.msra.mxu0 %v1133
    %1135 = vmatprep.subr.mxu0 0.0
    %v1136 = vand.u32 %v64, 4294901760
    %v1137 = vsub.f32 %v64, %v1136
    %v1138 = vand.u32 %v1137, 4294901760
    %v1139 = vsub.f32 %v1137, %v1138
    %v1140 = vand.u32 %v1139, 4294901760
    %1141 = vmatpush1.msra.mxu0 %v1140
    %1142 = vmatprep.subr.mxu0 0.0
    %v1143 = vand.u32 %v65, 4294901760
    %v1144 = vsub.f32 %v65, %v1143
    %v1145 = vand.u32 %v1144, 4294901760
    %v1146 = vsub.f32 %v1144, %v1145
    %v1147 = vand.u32 %v1146, 4294901760
    %1148 = vmatpush1.msra.mxu0 %v1147
    %1149 = vmatprep.subr.mxu0 0.0
    %v1150 = vand.u32 %v66, 4294901760
    %v1151 = vsub.f32 %v66, %v1150
    %v1152 = vand.u32 %v1151, 4294901760
    %v1153 = vsub.f32 %v1151, %v1152
    %v1154 = vand.u32 %v1153, 4294901760
    %1155 = vmatpush1.msra.mxu0 %v1154
    %1156 = vmatprep.subr.mxu0 0.0
    %v1157 = vand.u32 %v67, 4294901760
    %v1158 = vsub.f32 %v67, %v1157
    %v1159 = vand.u32 %v1158, 4294901760
    %v1160 = vsub.f32 %v1158, %v1159
    %v1161 = vand.u32 %v1160, 4294901760
    %1162 = vmatpush1.msra.mxu0 %v1161
    %1163 = vmatprep.subr.mxu0 0.0
    %v1164 = vand.u32 %v68, 4294901760
    %v1165 = vsub.f32 %v68, %v1164
    %v1166 = vand.u32 %v1165, 4294901760
    %v1167 = vsub.f32 %v1165, %v1166
    %v1168 = vand.u32 %v1167, 4294901760
    %1169 = vmatpush1.msra.mxu0 %v1168
    %1170 = vmatprep.subr.mxu0 0.0
    %v1171 = vand.u32 %v69, 4294901760
    %v1172 = vsub.f32 %v69, %v1171
    %v1173 = vand.u32 %v1172, 4294901760
    %v1174 = vsub.f32 %v1172, %v1173
    %v1175 = vand.u32 %v1174, 4294901760
    %1176 = vmatpush1.msra.mxu0 %v1175
    %1177 = vmatprep.subr.mxu0 0.0
    %v1178 = vand.u32 %v70, 4294901760
    %v1179 = vsub.f32 %v70, %v1178
    %v1180 = vand.u32 %v1179, 4294901760
    %v1181 = vsub.f32 %v1179, %v1180
    %v1182 = vand.u32 %v1181, 4294901760
    %1183 = vmatpush1.msra.mxu0 %v1182
    %1184 = vmatprep.subr.mxu0 0.0
    %v1185 = vand.u32 %v71, 4294901760
    %v1186 = vsub.f32 %v71, %v1185
    %v1187 = vand.u32 %v1186, 4294901760
    %v1188 = vsub.f32 %v1186, %v1187
    %v1189 = vand.u32 %v1188, 4294901760
    %1190 = vmatpush1.msra.mxu0 %v1189
    %1191 = vmatprep.subr.mxu0 0.0
    %v1192 = vand.u32 %v72, 4294901760
    %v1193 = vsub.f32 %v72, %v1192
    %v1194 = vand.u32 %v1193, 4294901760
    %v1195 = vsub.f32 %v1193, %v1194
    %v1196 = vand.u32 %v1195, 4294901760
    %1197 = vmatpush1.msra.mxu0 %v1196
    %1198 = vmatprep.subr.mxu0 0.0
    %v1199 = vand.u32 %v73, 4294901760
    %v1200 = vsub.f32 %v73, %v1199
    %v1201 = vand.u32 %v1200, 4294901760
    %v1202 = vsub.f32 %v1200, %v1201
    %v1203 = vand.u32 %v1202, 4294901760
    %1204 = vmatpush1.msra.mxu0 %v1203
    %1205 = vmatprep.subr.mxu0 0.0
    %v1206 = vand.u32 %v74, 4294901760
    %v1207 = vsub.f32 %v74, %v1206
    %v1208 = vand.u32 %v1207, 4294901760
    %v1209 = vsub.f32 %v1207, %v1208
    %v1210 = vand.u32 %v1209, 4294901760
    %1211 = vmatpush1.msra.mxu0 %v1210
    %1212 = vmatprep.subr.mxu0 0.0
    %v1213 = vand.u32 %v75, 4294901760
    %v1214 = vsub.f32 %v75, %v1213
    %v1215 = vand.u32 %v1214, 4294901760
    %v1216 = vsub.f32 %v1214, %v1215
    %v1217 = vand.u32 %v1216, 4294901760
    %1218 = vmatpush1.msra.mxu0 %v1217
    %1219 = vmatprep.subr.mxu0 0.0
    %v1220 = vand.u32 %v76, 4294901760
    %v1221 = vsub.f32 %v76, %v1220
    %v1222 = vand.u32 %v1221, 4294901760
    %v1223 = vsub.f32 %v1221, %v1222
    %v1224 = vand.u32 %v1223, 4294901760
    %1225 = vmatpush1.msra.mxu0 %v1224
    %1226 = vmatprep.subr.mxu0 0.0
    %v1227 = vand.u32 %v77, 4294901760
    %v1228 = vsub.f32 %v77, %v1227
    %v1229 = vand.u32 %v1228, 4294901760
    %v1230 = vsub.f32 %v1228, %v1229
    %v1231 = vand.u32 %v1230, 4294901760
    %1232 = vmatpush1.msra.mxu0 %v1231
    %1233 = vmatprep.subr.mxu0 0.0
    %v1234 = vand.u32 %v78, 4294901760
    %v1235 = vsub.f32 %v78, %v1234
    %v1236 = vand.u32 %v1235, 4294901760
    %v1237 = vsub.f32 %v1235, %v1236
    %v1238 = vand.u32 %v1237, 4294901760
    %1239 = vmatpush1.msra.mxu0 %v1238
    %1240 = vmatprep.subr.mxu0 0.0
    %v1241 = vand.u32 %v79, 4294901760
    %v1242 = vsub.f32 %v79, %v1241
    %v1243 = vand.u32 %v1242, 4294901760
    %v1244 = vsub.f32 %v1242, %v1243
    %v1245 = vand.u32 %v1244, 4294901760
    %1246 = vmatpush1.msra.mxu0 %v1245
    %1247 = vmatprep.subr.mxu0 0.0
    %v1248 = vand.u32 %v80, 4294901760
    %v1249 = vsub.f32 %v80, %v1248
    %v1250 = vand.u32 %v1249, 4294901760
    %v1251 = vsub.f32 %v1249, %v1250
    %v1252 = vand.u32 %v1251, 4294901760
    %1253 = vmatpush1.msra.mxu0 %v1252
    %1254 = vmatprep.subr.mxu0 0.0
    %v1255 = vand.u32 %v81, 4294901760
    %v1256 = vsub.f32 %v81, %v1255
    %v1257 = vand.u32 %v1256, 4294901760
    %v1258 = vsub.f32 %v1256, %v1257
    %v1259 = vand.u32 %v1258, 4294901760
    %1260 = vmatpush1.msra.mxu0 %v1259
    %1261 = vmatprep.subr.mxu0 0.0
    %v1262 = vand.u32 %v82, 4294901760
    %v1263 = vsub.f32 %v82, %v1262
    %v1264 = vand.u32 %v1263, 4294901760
    %v1265 = vsub.f32 %v1263, %v1264
    %v1266 = vand.u32 %v1265, 4294901760
    %1267 = vmatpush1.msra.mxu0 %v1266
    %1268 = vmatprep.subr.mxu0 0.0
    %v1269 = vand.u32 %v83, 4294901760
    %v1270 = vsub.f32 %v83, %v1269
    %v1271 = vand.u32 %v1270, 4294901760
    %v1272 = vsub.f32 %v1270, %v1271
    %v1273 = vand.u32 %v1272, 4294901760
    %1274 = vmatpush1.msra.mxu0 %v1273
    %1275 = vmatprep.subr.mxu0 0.0
    %v1276 = vand.u32 %v84, 4294901760
    %v1277 = vsub.f32 %v84, %v1276
    %v1278 = vand.u32 %v1277, 4294901760
    %v1279 = vsub.f32 %v1277, %v1278
    %v1280 = vand.u32 %v1279, 4294901760
    %1281 = vmatpush1.msra.mxu0 %v1280
    %1282 = vmatprep.subr.mxu0 0.0
    %v1283 = vand.u32 %v85, 4294901760
    %v1284 = vsub.f32 %v85, %v1283
    %v1285 = vand.u32 %v1284, 4294901760
    %v1286 = vsub.f32 %v1284, %v1285
    %v1287 = vand.u32 %v1286, 4294901760
    %1288 = vmatpush1.msra.mxu0 %v1287
    %1289 = vmatprep.subr.mxu0 0.0
    %v1290 = vand.u32 %v86, 4294901760
    %v1291 = vsub.f32 %v86, %v1290
    %v1292 = vand.u32 %v1291, 4294901760
    %v1293 = vsub.f32 %v1291, %v1292
    %v1294 = vand.u32 %v1293, 4294901760
    %1295 = vmatpush1.msra.mxu0 %v1294
    %1296 = vmatprep.subr.mxu0 0.0
    %v1297 = vand.u32 %v87, 4294901760
    %v1298 = vsub.f32 %v87, %v1297
    %v1299 = vand.u32 %v1298, 4294901760
    %v1300 = vsub.f32 %v1298, %v1299
    %v1301 = vand.u32 %v1300, 4294901760
    %1302 = vmatpush1.msra.mxu0 %v1301
    %v1303 = vand.u32 %v957, 4294901760
    %1304 = vmatprep.mubr.f32.mxu0 %v1303
    %v1305 = vand.u32 %v956, 4294901760
    %1306 = vmatmul.mubr.f32.gmra.mrb[0].mxu0 %v1305
    %v1307 = vpop.f32.mrb[0].mxu0
    %v1308 = vadd.f32 %v1076, %v1307
    %v1309 = vpop.f32.mrb[0].mxu0
    %1310 = vdwg.mxu0
    %1311 = vmatprep.subr.mxu0 0.0
    %v1312 = vand.u32 %v56, 4294901760
    %v1313 = vsub.f32 %v56, %v1312
    %1314 = vmatpush1.msra.mxu0 %v1313
    %1315 = vmatprep.subr.mxu0 0.0
    %v1316 = vand.u32 %v57, 4294901760
    %v1317 = vsub.f32 %v57, %v1316
    %1318 = vmatpush1.msra.mxu0 %v1317
    %1319 = vmatprep.subr.mxu0 0.0
    %v1320 = vand.u32 %v58, 4294901760
    %v1321 = vsub.f32 %v58, %v1320
    %1322 = vmatpush1.msra.mxu0 %v1321
    %1323 = vmatprep.subr.mxu0 0.0
    %v1324 = vand.u32 %v59, 4294901760
    %v1325 = vsub.f32 %v59, %v1324
    %1326 = vmatpush1.msra.mxu0 %v1325
    %1327 = vmatprep.subr.mxu0 0.0
    %v1328 = vand.u32 %v60, 4294901760
    %v1329 = vsub.f32 %v60, %v1328
    %1330 = vmatpush1.msra.mxu0 %v1329
    %1331 = vmatprep.subr.mxu0 0.0
    %v1332 = vand.u32 %v61, 4294901760
    %v1333 = vsub.f32 %v61, %v1332
    %1334 = vmatpush1.msra.mxu0 %v1333
    %1335 = vmatprep.subr.mxu0 0.0
    %v1336 = vand.u32 %v62, 4294901760
    %v1337 = vsub.f32 %v62, %v1336
    %1338 = vmatpush1.msra.mxu0 %v1337
    %1339 = vmatprep.subr.mxu0 0.0
    %v1340 = vand.u32 %v63, 4294901760
    %v1341 = vsub.f32 %v63, %v1340
    %1342 = vmatpush1.msra.mxu0 %v1341
    %1343 = vmatprep.subr.mxu0 0.0
    %v1344 = vand.u32 %v64, 4294901760
    %v1345 = vsub.f32 %v64, %v1344
    %1346 = vmatpush1.msra.mxu0 %v1345
    %1347 = vmatprep.subr.mxu0 0.0
    %v1348 = vand.u32 %v65, 4294901760
    %v1349 = vsub.f32 %v65, %v1348
    %1350 = vmatpush1.msra.mxu0 %v1349
    %1351 = vmatprep.subr.mxu0 0.0
    %v1352 = vand.u32 %v66, 4294901760
    %v1353 = vsub.f32 %v66, %v1352
    %1354 = vmatpush1.msra.mxu0 %v1353
    %1355 = vmatprep.subr.mxu0 0.0
    %v1356 = vand.u32 %v67, 4294901760
    %v1357 = vsub.f32 %v67, %v1356
    %1358 = vmatpush1.msra.mxu0 %v1357
    %1359 = vmatprep.subr.mxu0 0.0
    %v1360 = vand.u32 %v68, 4294901760
    %v1361 = vsub.f32 %v68, %v1360
    %1362 = vmatpush1.msra.mxu0 %v1361
    %1363 = vmatprep.subr.mxu0 0.0
    %v1364 = vand.u32 %v69, 4294901760
    %v1365 = vsub.f32 %v69, %v1364
    %1366 = vmatpush1.msra.mxu0 %v1365
    %1367 = vmatprep.subr.mxu0 0.0
    %v1368 = vand.u32 %v70, 4294901760
    %v1369 = vsub.f32 %v70, %v1368
    %1370 = vmatpush1.msra.mxu0 %v1369
    %1371 = vmatprep.subr.mxu0 0.0
    %v1372 = vand.u32 %v71, 4294901760
    %v1373 = vsub.f32 %v71, %v1372
    %1374 = vmatpush1.msra.mxu0 %v1373
    %1375 = vmatprep.subr.mxu0 0.0
    %v1376 = vand.u32 %v72, 4294901760
    %v1377 = vsub.f32 %v72, %v1376
    %1378 = vmatpush1.msra.mxu0 %v1377
    %1379 = vmatprep.subr.mxu0 0.0
    %v1380 = vand.u32 %v73, 4294901760
    %v1381 = vsub.f32 %v73, %v1380
    %1382 = vmatpush1.msra.mxu0 %v1381
    %1383 = vmatprep.subr.mxu0 0.0
    %v1384 = vand.u32 %v74, 4294901760
    %v1385 = vsub.f32 %v74, %v1384
    %1386 = vmatpush1.msra.mxu0 %v1385
    %1387 = vmatprep.subr.mxu0 0.0
    %v1388 = vand.u32 %v75, 4294901760
    %v1389 = vsub.f32 %v75, %v1388
    %1390 = vmatpush1.msra.mxu0 %v1389
    %1391 = vmatprep.subr.mxu0 0.0
    %v1392 = vand.u32 %v76, 4294901760
    %v1393 = vsub.f32 %v76, %v1392
    %1394 = vmatpush1.msra.mxu0 %v1393
    %1395 = vmatprep.subr.mxu0 0.0
    %v1396 = vand.u32 %v77, 4294901760
    %v1397 = vsub.f32 %v77, %v1396
    %1398 = vmatpush1.msra.mxu0 %v1397
    %1399 = vmatprep.subr.mxu0 0.0
    %v1400 = vand.u32 %v78, 4294901760
    %v1401 = vsub.f32 %v78, %v1400
    %1402 = vmatpush1.msra.mxu0 %v1401
    %1403 = vmatprep.subr.mxu0 0.0
    %v1404 = vand.u32 %v79, 4294901760
    %v1405 = vsub.f32 %v79, %v1404
    %1406 = vmatpush1.msra.mxu0 %v1405
    %1407 = vmatprep.subr.mxu0 0.0
    %v1408 = vand.u32 %v80, 4294901760
    %v1409 = vsub.f32 %v80, %v1408
    %1410 = vmatpush1.msra.mxu0 %v1409
    %1411 = vmatprep.subr.mxu0 0.0
    %v1412 = vand.u32 %v81, 4294901760
    %v1413 = vsub.f32 %v81, %v1412
    %1414 = vmatpush1.msra.mxu0 %v1413
    %1415 = vmatprep.subr.mxu0 0.0
    %v1416 = vand.u32 %v82, 4294901760
    %v1417 = vsub.f32 %v82, %v1416
    %1418 = vmatpush1.msra.mxu0 %v1417
    %1419 = vmatprep.subr.mxu0 0.0
    %v1420 = vand.u32 %v83, 4294901760
    %v1421 = vsub.f32 %v83, %v1420
    %1422 = vmatpush1.msra.mxu0 %v1421
    %1423 = vmatprep.subr.mxu0 0.0
    %v1424 = vand.u32 %v84, 4294901760
    %v1425 = vsub.f32 %v84, %v1424
    %1426 = vmatpush1.msra.mxu0 %v1425
    %1427 = vmatprep.subr.mxu0 0.0
    %v1428 = vand.u32 %v85, 4294901760
    %v1429 = vsub.f32 %v85, %v1428
    %1430 = vmatpush1.msra.mxu0 %v1429
    %1431 = vmatprep.subr.mxu0 0.0
    %v1432 = vand.u32 %v86, 4294901760
    %v1433 = vsub.f32 %v86, %v1432
    %1434 = vmatpush1.msra.mxu0 %v1433
    %1435 = vmatprep.subr.mxu0 0.0
    %v1436 = vand.u32 %v87, 4294901760
    %v1437 = vsub.f32 %v87, %v1436
    %1438 = vmatpush1.msra.mxu0 %v1437
    %v1439 = vand.u32 %v957, 4294901760
    %v1440 = vsub.f32 %v957, %v1439
    %1441 = vmatprep.mubr.f32.mxu0 %v1440
    %v1442 = vand.u32 %v956, 4294901760
    %v1443 = vsub.f32 %v956, %v1442
    %1444 = vmatmul.mubr.f32.gmra.mrb[0].mxu0 %v1443
    %v1445 = vpop.f32.mrb[0].mxu0
    %v1446 = vadd.f32 %v1308, %v1445
    %v1447 = vpop.f32.mrb[0].mxu0
    %1448 = vdwg.mxu0
    %1449 = vmatprep.subr.mxu0 0.0
    %v1450 = vand.u32 %v56, 4294901760
    %1451 = vmatpush1.msra.mxu0 %v1450
    %1452 = vmatprep.subr.mxu0 0.0
    %v1453 = vand.u32 %v57, 4294901760
    %1454 = vmatpush1.msra.mxu0 %v1453
    %1455 = vmatprep.subr.mxu0 0.0
    %v1456 = vand.u32 %v58, 4294901760
    %1457 = vmatpush1.msra.mxu0 %v1456
    %1458 = vmatprep.subr.mxu0 0.0
    %v1459 = vand.u32 %v59, 4294901760
    %1460 = vmatpush1.msra.mxu0 %v1459
    %1461 = vmatprep.subr.mxu0 0.0
    %v1462 = vand.u32 %v60, 4294901760
    %1463 = vmatpush1.msra.mxu0 %v1462
    %1464 = vmatprep.subr.mxu0 0.0
    %v1465 = vand.u32 %v61, 4294901760
    %1466 = vmatpush1.msra.mxu0 %v1465
    %1467 = vmatprep.subr.mxu0 0.0
    %v1468 = vand.u32 %v62, 4294901760
    %1469 = vmatpush1.msra.mxu0 %v1468
    %1470 = vmatprep.subr.mxu0 0.0
    %v1471 = vand.u32 %v63, 4294901760
    %1472 = vmatpush1.msra.mxu0 %v1471
    %1473 = vmatprep.subr.mxu0 0.0
    %v1474 = vand.u32 %v64, 4294901760
    %1475 = vmatpush1.msra.mxu0 %v1474
    %1476 = vmatprep.subr.mxu0 0.0
    %v1477 = vand.u32 %v65, 4294901760
    %1478 = vmatpush1.msra.mxu0 %v1477
    %1479 = vmatprep.subr.mxu0 0.0
    %v1480 = vand.u32 %v66, 4294901760
    %1481 = vmatpush1.msra.mxu0 %v1480
    %1482 = vmatprep.subr.mxu0 0.0
    %v1483 = vand.u32 %v67, 4294901760
    %1484 = vmatpush1.msra.mxu0 %v1483
    %1485 = vmatprep.subr.mxu0 0.0
    %v1486 = vand.u32 %v68, 4294901760
    %1487 = vmatpush1.msra.mxu0 %v1486
    %1488 = vmatprep.subr.mxu0 0.0
    %v1489 = vand.u32 %v69, 4294901760
    %1490 = vmatpush1.msra.mxu0 %v1489
    %1491 = vmatprep.subr.mxu0 0.0
    %v1492 = vand.u32 %v70, 4294901760
    %1493 = vmatpush1.msra.mxu0 %v1492
    %1494 = vmatprep.subr.mxu0 0.0
    %v1495 = vand.u32 %v71, 4294901760
    %1496 = vmatpush1.msra.mxu0 %v1495
    %1497 = vmatprep.subr.mxu0 0.0
    %v1498 = vand.u32 %v72, 4294901760
    %1499 = vmatpush1.msra.mxu0 %v1498
    %1500 = vmatprep.subr.mxu0 0.0
    %v1501 = vand.u32 %v73, 4294901760
    %1502 = vmatpush1.msra.mxu0 %v1501
    %1503 = vmatprep.subr.mxu0 0.0
    %v1504 = vand.u32 %v74, 4294901760
    %1505 = vmatpush1.msra.mxu0 %v1504
    %1506 = vmatprep.subr.mxu0 0.0
    %v1507 = vand.u32 %v75, 4294901760
    %1508 = vmatpush1.msra.mxu0 %v1507
    %1509 = vmatprep.subr.mxu0 0.0
    %v1510 = vand.u32 %v76, 4294901760
    %1511 = vmatpush1.msra.mxu0 %v1510
    %1512 = vmatprep.subr.mxu0 0.0
    %v1513 = vand.u32 %v77, 4294901760
    %1514 = vmatpush1.msra.mxu0 %v1513
    %1515 = vmatprep.subr.mxu0 0.0
    %v1516 = vand.u32 %v78, 4294901760
    %1517 = vmatpush1.msra.mxu0 %v1516
    %1518 = vmatprep.subr.mxu0 0.0
    %v1519 = vand.u32 %v79, 4294901760
    %1520 = vmatpush1.msra.mxu0 %v1519
    %1521 = vmatprep.subr.mxu0 0.0
    %v1522 = vand.u32 %v80, 4294901760
    %1523 = vmatpush1.msra.mxu0 %v1522
    %1524 = vmatprep.subr.mxu0 0.0
    %v1525 = vand.u32 %v81, 4294901760
    %1526 = vmatpush1.msra.mxu0 %v1525
    %1527 = vmatprep.subr.mxu0 0.0
    %v1528 = vand.u32 %v82, 4294901760
    %1529 = vmatpush1.msra.mxu0 %v1528
    %1530 = vmatprep.subr.mxu0 0.0
    %v1531 = vand.u32 %v83, 4294901760
    %1532 = vmatpush1.msra.mxu0 %v1531
    %1533 = vmatprep.subr.mxu0 0.0
    %v1534 = vand.u32 %v84, 4294901760
    %1535 = vmatpush1.msra.mxu0 %v1534
    %1536 = vmatprep.subr.mxu0 0.0
    %v1537 = vand.u32 %v85, 4294901760
    %1538 = vmatpush1.msra.mxu0 %v1537
    %1539 = vmatprep.subr.mxu0 0.0
    %v1540 = vand.u32 %v86, 4294901760
    %1541 = vmatpush1.msra.mxu0 %v1540
    %1542 = vmatprep.subr.mxu0 0.0
    %v1543 = vand.u32 %v87, 4294901760
    %1544 = vmatpush1.msra.mxu0 %v1543
    %v1545 = vand.u32 %v957, 4294901760
    %v1546 = vsub.f32 %v957, %v1545
    %v1547 = vand.u32 %v1546, 4294901760
    %1548 = vmatprep.mubr.f32.mxu0 %v1547
    %v1549 = vand.u32 %v956, 4294901760
    %v1550 = vsub.f32 %v956, %v1549
    %v1551 = vand.u32 %v1550, 4294901760
    %1552 = vmatmul.mubr.f32.gmra.mrb[0].mxu0 %v1551
    %v1553 = vpop.f32.mrb[0].mxu0
    %v1554 = vadd.f32 %v1446, %v1553
    %v1555 = vpop.f32.mrb[0].mxu0
    %1556 = vdwg.mxu0
    %1557 = vmatprep.subr.mxu0 0.0
    %v1558 = vand.u32 %v56, 4294901760
    %v1559 = vsub.f32 %v56, %v1558
    %v1560 = vand.u32 %v1559, 4294901760
    %1561 = vmatpush1.msra.mxu0 %v1560
    %1562 = vmatprep.subr.mxu0 0.0
    %v1563 = vand.u32 %v57, 4294901760
    %v1564 = vsub.f32 %v57, %v1563
    %v1565 = vand.u32 %v1564, 4294901760
    %1566 = vmatpush1.msra.mxu0 %v1565
    %1567 = vmatprep.subr.mxu0 0.0
    %v1568 = vand.u32 %v58, 4294901760
    %v1569 = vsub.f32 %v58, %v1568
    %v1570 = vand.u32 %v1569, 4294901760
    %1571 = vmatpush1.msra.mxu0 %v1570
    %1572 = vmatprep.subr.mxu0 0.0
    %v1573 = vand.u32 %v59, 4294901760
    %v1574 = vsub.f32 %v59, %v1573
    %v1575 = vand.u32 %v1574, 4294901760
    %1576 = vmatpush1.msra.mxu0 %v1575
    %1577 = vmatprep.subr.mxu0 0.0
    %v1578 = vand.u32 %v60, 4294901760
    %v1579 = vsub.f32 %v60, %v1578
    %v1580 = vand.u32 %v1579, 4294901760
    %1581 = vmatpush1.msra.mxu0 %v1580
    %1582 = vmatprep.subr.mxu0 0.0
    %v1583 = vand.u32 %v61, 4294901760
    %v1584 = vsub.f32 %v61, %v1583
    %v1585 = vand.u32 %v1584, 4294901760
    %1586 = vmatpush1.msra.mxu0 %v1585
    %1587 = vmatprep.subr.mxu0 0.0
    %v1588 = vand.u32 %v62, 4294901760
    %v1589 = vsub.f32 %v62, %v1588
    %v1590 = vand.u32 %v1589, 4294901760
    %1591 = vmatpush1.msra.mxu0 %v1590
    %1592 = vmatprep.subr.mxu0 0.0
    %v1593 = vand.u32 %v63, 4294901760
    %v1594 = vsub.f32 %v63, %v1593
    %v1595 = vand.u32 %v1594, 4294901760
    %1596 = vmatpush1.msra.mxu0 %v1595
    %1597 = vmatprep.subr.mxu0 0.0
    %v1598 = vand.u32 %v64, 4294901760
    %v1599 = vsub.f32 %v64, %v1598
    %v1600 = vand.u32 %v1599, 4294901760
    %1601 = vmatpush1.msra.mxu0 %v1600
    %1602 = vmatprep.subr.mxu0 0.0
    %v1603 = vand.u32 %v65, 4294901760
    %v1604 = vsub.f32 %v65, %v1603
    %v1605 = vand.u32 %v1604, 4294901760
    %1606 = vmatpush1.msra.mxu0 %v1605
    %1607 = vmatprep.subr.mxu0 0.0
    %v1608 = vand.u32 %v66, 4294901760
    %v1609 = vsub.f32 %v66, %v1608
    %v1610 = vand.u32 %v1609, 4294901760
    %1611 = vmatpush1.msra.mxu0 %v1610
    %1612 = vmatprep.subr.mxu0 0.0
    %v1613 = vand.u32 %v67, 4294901760
    %v1614 = vsub.f32 %v67, %v1613
    %v1615 = vand.u32 %v1614, 4294901760
    %1616 = vmatpush1.msra.mxu0 %v1615
    %1617 = vmatprep.subr.mxu0 0.0
    %v1618 = vand.u32 %v68, 4294901760
    %v1619 = vsub.f32 %v68, %v1618
    %v1620 = vand.u32 %v1619, 4294901760
    %1621 = vmatpush1.msra.mxu0 %v1620
    %1622 = vmatprep.subr.mxu0 0.0
    %v1623 = vand.u32 %v69, 4294901760
    %v1624 = vsub.f32 %v69, %v1623
    %v1625 = vand.u32 %v1624, 4294901760
    %1626 = vmatpush1.msra.mxu0 %v1625
    %1627 = vmatprep.subr.mxu0 0.0
    %v1628 = vand.u32 %v70, 4294901760
    %v1629 = vsub.f32 %v70, %v1628
    %v1630 = vand.u32 %v1629, 4294901760
    %1631 = vmatpush1.msra.mxu0 %v1630
    %1632 = vmatprep.subr.mxu0 0.0
    %v1633 = vand.u32 %v71, 4294901760
    %v1634 = vsub.f32 %v71, %v1633
    %v1635 = vand.u32 %v1634, 4294901760
    %1636 = vmatpush1.msra.mxu0 %v1635
    %1637 = vmatprep.subr.mxu0 0.0
    %v1638 = vand.u32 %v72, 4294901760
    %v1639 = vsub.f32 %v72, %v1638
    %v1640 = vand.u32 %v1639, 4294901760
    %1641 = vmatpush1.msra.mxu0 %v1640
    %1642 = vmatprep.subr.mxu0 0.0
    %v1643 = vand.u32 %v73, 4294901760
    %v1644 = vsub.f32 %v73, %v1643
    %v1645 = vand.u32 %v1644, 4294901760
    %1646 = vmatpush1.msra.mxu0 %v1645
    %1647 = vmatprep.subr.mxu0 0.0
    %v1648 = vand.u32 %v74, 4294901760
    %v1649 = vsub.f32 %v74, %v1648
    %v1650 = vand.u32 %v1649, 4294901760
    %1651 = vmatpush1.msra.mxu0 %v1650
    %1652 = vmatprep.subr.mxu0 0.0
    %v1653 = vand.u32 %v75, 4294901760
    %v1654 = vsub.f32 %v75, %v1653
    %v1655 = vand.u32 %v1654, 4294901760
    %1656 = vmatpush1.msra.mxu0 %v1655
    %1657 = vmatprep.subr.mxu0 0.0
    %v1658 = vand.u32 %v76, 4294901760
    %v1659 = vsub.f32 %v76, %v1658
    %v1660 = vand.u32 %v1659, 4294901760
    %1661 = vmatpush1.msra.mxu0 %v1660
    %1662 = vmatprep.subr.mxu0 0.0
    %v1663 = vand.u32 %v77, 4294901760
    %v1664 = vsub.f32 %v77, %v1663
    %v1665 = vand.u32 %v1664, 4294901760
    %1666 = vmatpush1.msra.mxu0 %v1665
    %1667 = vmatprep.subr.mxu0 0.0
    %v1668 = vand.u32 %v78, 4294901760
    %v1669 = vsub.f32 %v78, %v1668
    %v1670 = vand.u32 %v1669, 4294901760
    %1671 = vmatpush1.msra.mxu0 %v1670
    %1672 = vmatprep.subr.mxu0 0.0
    %v1673 = vand.u32 %v79, 4294901760
    %v1674 = vsub.f32 %v79, %v1673
    %v1675 = vand.u32 %v1674, 4294901760
    %1676 = vmatpush1.msra.mxu0 %v1675
    %1677 = vmatprep.subr.mxu0 0.0
    %v1678 = vand.u32 %v80, 4294901760
    %v1679 = vsub.f32 %v80, %v1678
    %v1680 = vand.u32 %v1679, 4294901760
    %1681 = vmatpush1.msra.mxu0 %v1680
    %1682 = vmatprep.subr.mxu0 0.0
    %v1683 = vand.u32 %v81, 4294901760
    %v1684 = vsub.f32 %v81, %v1683
    %v1685 = vand.u32 %v1684, 4294901760
    %1686 = vmatpush1.msra.mxu0 %v1685
    %1687 = vmatprep.subr.mxu0 0.0
    %v1688 = vand.u32 %v82, 4294901760
    %v1689 = vsub.f32 %v82, %v1688
    %v1690 = vand.u32 %v1689, 4294901760
    %1691 = vmatpush1.msra.mxu0 %v1690
    %1692 = vmatprep.subr.mxu0 0.0
    %v1693 = vand.u32 %v83, 4294901760
    %v1694 = vsub.f32 %v83, %v1693
    %v1695 = vand.u32 %v1694, 4294901760
    %1696 = vmatpush1.msra.mxu0 %v1695
    %1697 = vmatprep.subr.mxu0 0.0
    %v1698 = vand.u32 %v84, 4294901760
    %v1699 = vsub.f32 %v84, %v1698
    %v1700 = vand.u32 %v1699, 4294901760
    %1701 = vmatpush1.msra.mxu0 %v1700
    %1702 = vmatprep.subr.mxu0 0.0
    %v1703 = vand.u32 %v85, 4294901760
    %v1704 = vsub.f32 %v85, %v1703
    %v1705 = vand.u32 %v1704, 4294901760
    %1706 = vmatpush1.msra.mxu0 %v1705
    %1707 = vmatprep.subr.mxu0 0.0
    %v1708 = vand.u32 %v86, 4294901760
    %v1709 = vsub.f32 %v86, %v1708
    %v1710 = vand.u32 %v1709, 4294901760
    %1711 = vmatpush1.msra.mxu0 %v1710
    %1712 = vmatprep.subr.mxu0 0.0
    %v1713 = vand.u32 %v87, 4294901760
    %v1714 = vsub.f32 %v87, %v1713
    %v1715 = vand.u32 %v1714, 4294901760
    %1716 = vmatpush1.msra.mxu0 %v1715
    %v1717 = vand.u32 %v957, 4294901760
    %1718 = vmatprep.mubr.f32.mxu0 %v1717
    %v1719 = vand.u32 %v956, 4294901760
    %1720 = vmatmul.mubr.f32.gmra.mrb[0].mxu0 %v1719
    %v1721 = vpop.f32.mrb[0].mxu0
    %v1722 = vadd.f32 %v1554, %v1721
    %v1723 = vpop.f32.mrb[0].mxu0
    %1724 = vdwg.mxu0
    %1725 = vmatprep.subr.mxu0 0.0
    %v1726 = vand.u32 %v56, 4294901760
    %1727 = vmatpush1.msra.mxu0 %v1726
    %1728 = vmatprep.subr.mxu0 0.0
    %v1729 = vand.u32 %v57, 4294901760
    %1730 = vmatpush1.msra.mxu0 %v1729
    %1731 = vmatprep.subr.mxu0 0.0
    %v1732 = vand.u32 %v58, 4294901760
    %1733 = vmatpush1.msra.mxu0 %v1732
    %1734 = vmatprep.subr.mxu0 0.0
    %v1735 = vand.u32 %v59, 4294901760
    %1736 = vmatpush1.msra.mxu0 %v1735
    %1737 = vmatprep.subr.mxu0 0.0
    %v1738 = vand.u32 %v60, 4294901760
    %1739 = vmatpush1.msra.mxu0 %v1738
    %1740 = vmatprep.subr.mxu0 0.0
    %v1741 = vand.u32 %v61, 4294901760
    %1742 = vmatpush1.msra.mxu0 %v1741
    %1743 = vmatprep.subr.mxu0 0.0
    %v1744 = vand.u32 %v62, 4294901760
    %1745 = vmatpush1.msra.mxu0 %v1744
    %1746 = vmatprep.subr.mxu0 0.0
    %v1747 = vand.u32 %v63, 4294901760
    %1748 = vmatpush1.msra.mxu0 %v1747
    %1749 = vmatprep.subr.mxu0 0.0
    %v1750 = vand.u32 %v64, 4294901760
    %1751 = vmatpush1.msra.mxu0 %v1750
    %1752 = vmatprep.subr.mxu0 0.0
    %v1753 = vand.u32 %v65, 4294901760
    %1754 = vmatpush1.msra.mxu0 %v1753
    %1755 = vmatprep.subr.mxu0 0.0
    %v1756 = vand.u32 %v66, 4294901760
    %1757 = vmatpush1.msra.mxu0 %v1756
    %1758 = vmatprep.subr.mxu0 0.0
    %v1759 = vand.u32 %v67, 4294901760
    %1760 = vmatpush1.msra.mxu0 %v1759
    %1761 = vmatprep.subr.mxu0 0.0
    %v1762 = vand.u32 %v68, 4294901760
    %1763 = vmatpush1.msra.mxu0 %v1762
    %1764 = vmatprep.subr.mxu0 0.0
    %v1765 = vand.u32 %v69, 4294901760
    %1766 = vmatpush1.msra.mxu0 %v1765
    %1767 = vmatprep.subr.mxu0 0.0
    %v1768 = vand.u32 %v70, 4294901760
    %1769 = vmatpush1.msra.mxu0 %v1768
    %1770 = vmatprep.subr.mxu0 0.0
    %v1771 = vand.u32 %v71, 4294901760
    %1772 = vmatpush1.msra.mxu0 %v1771
    %1773 = vmatprep.subr.mxu0 0.0
    %v1774 = vand.u32 %v72, 4294901760
    %1775 = vmatpush1.msra.mxu0 %v1774
    %1776 = vmatprep.subr.mxu0 0.0
    %v1777 = vand.u32 %v73, 4294901760
    %1778 = vmatpush1.msra.mxu0 %v1777
    %1779 = vmatprep.subr.mxu0 0.0
    %v1780 = vand.u32 %v74, 4294901760
    %1781 = vmatpush1.msra.mxu0 %v1780
    %1782 = vmatprep.subr.mxu0 0.0
    %v1783 = vand.u32 %v75, 4294901760
    %1784 = vmatpush1.msra.mxu0 %v1783
    %1785 = vmatprep.subr.mxu0 0.0
    %v1786 = vand.u32 %v76, 4294901760
    %1787 = vmatpush1.msra.mxu0 %v1786
    %1788 = vmatprep.subr.mxu0 0.0
    %v1789 = vand.u32 %v77, 4294901760
    %1790 = vmatpush1.msra.mxu0 %v1789
    %1791 = vmatprep.subr.mxu0 0.0
    %v1792 = vand.u32 %v78, 4294901760
    %1793 = vmatpush1.msra.mxu0 %v1792
    %1794 = vmatprep.subr.mxu0 0.0
    %v1795 = vand.u32 %v79, 4294901760
    %1796 = vmatpush1.msra.mxu0 %v1795
    %1797 = vmatprep.subr.mxu0 0.0
    %v1798 = vand.u32 %v80, 4294901760
    %1799 = vmatpush1.msra.mxu0 %v1798
    %1800 = vmatprep.subr.mxu0 0.0
    %v1801 = vand.u32 %v81, 4294901760
    %1802 = vmatpush1.msra.mxu0 %v1801
    %1803 = vmatprep.subr.mxu0 0.0
    %v1804 = vand.u32 %v82, 4294901760
    %1805 = vmatpush1.msra.mxu0 %v1804
    %1806 = vmatprep.subr.mxu0 0.0
    %v1807 = vand.u32 %v83, 4294901760
    %1808 = vmatpush1.msra.mxu0 %v1807
    %1809 = vmatprep.subr.mxu0 0.0
    %v1810 = vand.u32 %v84, 4294901760
    %1811 = vmatpush1.msra.mxu0 %v1810
    %1812 = vmatprep.subr.mxu0 0.0
    %v1813 = vand.u32 %v85, 4294901760
    %1814 = vmatpush1.msra.mxu0 %v1813
    %1815 = vmatprep.subr.mxu0 0.0
    %v1816 = vand.u32 %v86, 4294901760
    %1817 = vmatpush1.msra.mxu0 %v1816
    %1818 = vmatprep.subr.mxu0 0.0
    %v1819 = vand.u32 %v87, 4294901760
    %1820 = vmatpush1.msra.mxu0 %v1819
    %v1821 = vand.u32 %v957, 4294901760
    %1822 = vmatprep.mubr.f32.mxu0 %v1821
    %v1823 = vand.u32 %v956, 4294901760
    %1824 = vmatmul.mubr.f32.gmra.mrb[0].mxu0 %v1823
    %v1825 = vpop.f32.mrb[0].mxu0
    %v1826 = vadd.f32 %v1722, %v1825
    %v1827 = vpop.f32.mrb[0].mxu0
    %1828 = vdwg.mxu0
    %vm1829 = vcmask 57344
    %1830 = vst.msk [vmem:[#allocation3] sm:$0x1] %vm1829, %v1826
    // Predicated region
    $region22: #{linear_regression_forward.1} parent=1 // pred_check
      _
    $region23: #{linear_regression_forward.1} parent=1 // pred_check_branch
      %1832 = sbr.rel (0) target = $region25
    $region24: #{linear_regression_forward.1} parent=1 // pred_region
      %s1834 = ssub.s32 16, 16
      %1835 = vsyncadd [#allocation4], %s1834
      %s1837 = sshll.u32 [#allocation3], 4
      %s1838 = int_to_ptr.vmem [resolvable:$true] %s1837
      %1840 = dma.vmem_to_hbm [thread:$0]  %s1838, 16, %s5, [#allocation4]
    $region25: #{linear_regression_forward.1} parent=1 // pred_fallthru
      _
    // Predicated region
    $region26: #{linear_regression_forward.1} parent=1 // pred_check
      _
    $region27: #{linear_regression_forward.1} parent=1 // pred_check_branch
      %1842 = sbr.rel (0) target = $region29
    $region28: #{linear_regression_forward.1} parent=1 // pred_region
      %1843 = dma.done [#allocation4], 16
    $region29: #{linear_regression_forward.1} parent=1 // pred_fallthru
      _
    %1844 = vsyncpa [#allocation4], 1

</llo_original>
